<compile_context>
chip_gen: v5e
topology: v5e:2x2
jax: 0.10.0
libtpu: 0.0.40
codegen_flags: <defaults>
</compile_context>

<pallas_src>
import functools

import jax
import jax.numpy as jnp
import numpy as np
from jax.experimental import pallas as pl
from jax.experimental.pallas import tpu as pltpu

K = 7      # spatial-attention conv kernel size
PAD = 3    # conv padding ("same")


def _cbam_kernel(w1t_ref, w2t_ref, mask_ref, wsp_ref, x_ref, o_ref, *, H, W,
                 compute_dtype):
    """One batch block. x_ref / o_ref: (NB, C, H*W). Weights are broadcast."""
    HW = H * W
    NB = x_ref.shape[0]
    C = x_ref.shape[1]
    f32 = jnp.float32
    hp = jax.lax.Precision.HIGHEST

    # ---------------- Channel attention ----------------
    # Pooled descriptors (tiny); sums accumulate in f32 even for bf16 slabs.
    avg_c = jnp.sum(x_ref[...], axis=2, dtype=f32) * (1.0 / HW)       # (NB, C)
    max_c = jnp.max(x_ref[...], axis=2).astype(f32)                   # (NB, C)

    # Shared MLP on the MXU: one (2*NB, C) operand through both 1x1 convs.
    pooled = jnp.concatenate([avg_c, max_c], axis=0)                  # (2NB, C)
    h = jnp.maximum(
        jnp.dot(pooled, w1t_ref[...], preferred_element_type=f32, precision=hp),
        0.0)                                                          # (2NB, Cr)
    y = jnp.dot(h, w2t_ref[...], preferred_element_type=f32, precision=hp)
    ca = jax.nn.sigmoid(y[:NB] + y[NB:])                              # (NB, C) f32
    ca_s = ca.astype(compute_dtype)[:, :, None]                       # (NB, C, 1)

    # ---------------- Spatial attention ----------------
    # ca is fused into the channel reductions; the channel-scaled slab is never
    # kept live across the conv (each pass re-reads the VMEM input block).
    avg_s = jnp.sum(x_ref[...].astype(compute_dtype) * ca_s,
                    axis=1, dtype=f32) * (1.0 / C)                    # (NB, HW)
    max_s = jnp.max(x_ref[...].astype(compute_dtype) * ca_s,
                    axis=1).astype(f32)                               # (NB, HW)

    # Both pooled channels stacked along the sublane/batch axis so every
    # shifted conv slice is extracted once and reused for both channels.
    pooled_s = jnp.concatenate([avg_s, max_s], axis=0)                # (2NB, HW)
    zpad = jnp.zeros((2 * NB, PAD * W + PAD), f32)
    ext = jnp.concatenate([zpad, pooled_s, zpad], axis=-1)            # (2NB, HW+6W+6)

    masks = mask_ref[...]                                             # (K, HW) 0/1
    w_tap = [wsp_ref[i] for i in range(2 * K * K)]                    # hoisted SMEM reads
    is_avg = jax.lax.broadcasted_iota(jnp.int32, (2 * NB, 1), 0) < NB

    # 7 independent per-dx partial sums (ILP), column mask applied once per dx.
    parts = []
    for dx in range(K):
        g = None
        for dy in range(K):
            off = dy * W + dx
            col = jnp.where(is_avg, w_tap[dy * K + dx],
                            w_tap[K * K + dy * K + dx])               # (2NB, 1)
            term = col * ext[:, off:off + HW]
            g = term if g is None else g + term
        parts.append(masks[dx:dx + 1, :] * g)
    s01 = parts[0] + parts[1]
    s23 = parts[2] + parts[3]
    s45 = parts[4] + parts[5]
    conv = (s01 + s23) + (s45 + parts[6])                             # (2NB, HW)

    att = jax.nn.sigmoid(conv[:NB] + conv[NB:])                       # (NB, HW) f32
    att_s = att.astype(compute_dtype)[:, None, :]                     # (NB, 1, HW)

    # ca folded into the final store: o = x * ca * att.
    o_ref[...] = (x_ref[...].astype(compute_dtype) * ca_s * att_s).astype(o_ref.dtype)


def cbam(x, w_ca1, w_ca2, w_sp, *, batch_block=None, compute_dtype=None):
    """CBAM forward.

    x     : (N, C, H, W)      (float32 or bfloat16; output dtype == input dtype)
    w_ca1 : (C//8, C)         first 1x1 conv of the channel-attention MLP
    w_ca2 : (C, C//8)         second 1x1 conv
    w_sp  : (1, 2, 7, 7)      spatial-attention conv weight (OIHW, no bias)
    compute_dtype : dtype for the slab elementwise passes.  Defaults to the
        input dtype (bf16 stays bf16 on v6e/v7x); pass jnp.float32 on v5e.
    """
    N, C, H, W = x.shape
    HW = H * W
    Cr = w_ca1.shape[0]

    if compute_dtype is None:
        compute_dtype = jnp.bfloat16 if x.dtype == jnp.bfloat16 else jnp.float32

    # Lane-dense layout for all heavy I/O (H*W on the lane axis).
    x_flat = x.reshape(N, C, HW)

    in_bytes = x.dtype.itemsize
    cmp_bytes = jnp.dtype(compute_dtype).itemsize
    # Per-element VMEM footprint: in+out blocks (double-buffered, input dtype)
    # + compute-dtype / f32 working slabs + pooled maps / conv extension.
    per_n = ((4 * in_bytes + 4 * cmp_bytes + 8) * C * HW
             + 64 * HW * 4)

    if batch_block is None:
        budget = 12 * 1024 * 1024          # fits v5e's 16 MiB default scoped VMEM
        batch_block = max(1, min(N, budget // max(per_n, 1)))
        # Keep >= ~4 grid steps when N allows: pipelining depth + both v7x TCs.
        batch_block = min(batch_block, max(1, -(-N // 4)))
    nb = int(batch_block)
    grid = (pl.cdiv(N, nb),)

    # Explicit scoped-VMEM limit sized to the real footprint (with headroom).
    est_bytes = nb * per_n + 2 * 1024 * 1024
    vmem_limit = int(max(24 * 1024 * 1024, min(est_bytes, 112 * 1024 * 1024)))

    # Per-dx column-validity masks for the conv in flattened (H*W) layout.
    col = np.arange(HW, dtype=np.int64) % W
    mask_np = np.stack([((col + dx - PAD >= 0) & (col + dx - PAD < W))
                        for dx in range(K)]).astype(np.float32)       # (K, HW)
    col_masks = jnp.asarray(mask_np)

    w1t = jnp.asarray(w_ca1, jnp.float32).T                  # (C, Cr)
    w2t = jnp.asarray(w_ca2, jnp.float32).T                  # (Cr, C)
    wsp_flat = jnp.asarray(w_sp, jnp.float32).reshape(-1)    # (2*K*K,)

    # Advisory cost estimate for XLA's scheduler around the custom call.
    flops = int(N * (7 * C * HW + 2 * 2 * K * K * HW + 8 * C * Cr))
    transcendentals = int(N * (C + HW))
    bytes_accessed = int(2 * N * C * HW * in_bytes
                         + 4 * (2 * C * Cr + K * HW + 2 * K * K))

    kernel = functools.partial(_cbam_kernel, H=H, W=W, compute_dtype=compute_dtype)
    out_flat = pl.pallas_call(
        kernel,
        out_shape=jax.ShapeDtypeStruct((N, C, HW), x.dtype),
        grid=grid,
        in_specs=[
            pl.BlockSpec((C, Cr), lambda n: (0, 0)),                   # w1t
            pl.BlockSpec((Cr, C), lambda n: (0, 0)),                   # w2t
            pl.BlockSpec((K, HW), lambda n: (0, 0)),                   # col masks
            pl.BlockSpec(memory_space=pltpu.MemorySpace.SMEM),         # conv w
            pl.BlockSpec((nb, C, HW), lambda n: (n, 0, 0)),            # x
        ],
        out_specs=pl.BlockSpec((nb, C, HW), lambda n: (n, 0, 0)),
        compiler_params=pltpu.CompilerParams(
            dimension_semantics=("parallel",),
            vmem_limit_bytes=vmem_limit),
        cost_estimate=pl.CostEstimate(flops=flops,
                                      transcendentals=transcendentals,
                                      bytes_accessed=bytes_accessed),
    )(w1t, w2t, col_masks, wsp_flat, x_flat)
    return out_flat.reshape(N, C, H, W)


def cbam_reference(x, w_ca1, w_ca2, w_sp):
    """Pure-JAX reference mirroring the PyTorch CBAM forward (exact f32)."""
    hp = jax.lax.Precision.HIGHEST
    xf = x.astype(jnp.float32)

    # Channel attention.
    avg = jnp.mean(xf, axis=(2, 3))
    mx = jnp.max(xf, axis=(2, 3))

    def mlp(v):
        h = jax.nn.relu(jnp.einsum("nc,rc->nr", v, w_ca1, precision=hp))
        return jnp.einsum("nr,cr->nc", h, w_ca2, precision=hp)

    ca = jax.nn.sigmoid(mlp(avg) + mlp(mx))
    xf = xf * ca[:, :, None, None]

    # Spatial attention.
    avg_s = jnp.mean(xf, axis=1, keepdims=True)
    max_s = jnp.max(xf, axis=1, keepdims=True)
    att_in = jnp.concatenate([avg_s, max_s], axis=1)
    conv = jax.lax.conv_general_dilated(
        att_in, w_sp, window_strides=(1, 1),
        padding=[(PAD, PAD), (PAD, PAD)],
        dimension_numbers=("NCHW", "OIHW", "NCHW"), precision=hp)
    return xf * jax.nn.sigmoid(conv)


if __name__ == "__main__":
    key = jax.random.PRNGKey(0)
    kx, k1, k2, k3 = jax.random.split(key, 4)

    N, C, H, W = 2, 32, 16, 16          # C // 8 = 4 for the channel-attention MLP
    Cr = C // 8
    x = jax.random.normal(kx, (N, C, H, W), dtype=jnp.float32)
    w_ca1 = jax.random.normal(k1, (Cr, C), dtype=jnp.float32) * 0.1
    w_ca2 = jax.random.normal(k2, (C, Cr), dtype=jnp.float32) * 0.1
    w_sp = jax.random.normal(k3, (1, 2, K, K), dtype=jnp.float32) * 0.05

    # float32 path (auto batch_block -> 2 grid steps, exercises the index maps).
    out = jax.block_until_ready(cbam(x, w_ca1, w_ca2, w_sp))
    ref = jax.block_until_ready(cbam_reference(x, w_ca1, w_ca2, w_sp))
    np.testing.assert_allclose(np.asarray(out), np.asarray(ref),
                               rtol=1e-4, atol=1e-4)

    # bf16 I/O + bf16-resident slab (f32 accumulation for the pooled reductions).
    x_bf16 = x.astype(jnp.bfloat16)
    out_bf16 = jax.block_until_ready(cbam(x_bf16, w_ca1, w_ca2, w_sp))
    assert out_bf16.dtype == jnp.bfloat16
    ref_bf16 = cbam_reference(x_bf16.astype(jnp.float32), w_ca1, w_ca2, w_sp)
    np.testing.assert_allclose(np.asarray(out_bf16.astype(jnp.float32)),
                               np.asarray(ref_bf16), rtol=4e-2, atol=4e-2)

    # Ragged batch (N not divisible by batch_block): padded rows are discarded
    # by the masked output write.
    N3 = 3
    x3 = jax.random.normal(jax.random.PRNGKey(7), (N3, C, H, W), dtype=jnp.float32)
    out3 = jax.block_until_ready(cbam(x3, w_ca1, w_ca2, w_sp, batch_block=2))
    ref3 = jax.block_until_ready(cbam_reference(x3, w_ca1, w_ca2, w_sp))
    np.testing.assert_allclose(np.asarray(out3), np.asarray(ref3),
                               rtol=1e-4, atol=1e-4)

    print("KERNEL_OK")
</pallas_src>

<mosaic_0001>
module attributes {stable_mosaic.version = 11 : i64} {
  func.func @_cbam_kernel(%arg0: i32, %arg1: memref<32x4xf32, #tpu.memory_space<vmem>>, %arg2: memref<4x32xf32, #tpu.memory_space<vmem>>, %arg3: memref<7x256xf32, #tpu.memory_space<vmem>>, %arg4: memref<98xf32, #tpu.memory_space<smem>>, %arg5: memref<1x32x256xf32, #tpu.memory_space<vmem>>, %arg6: memref<1x32x256xf32, #tpu.memory_space<vmem>>) attributes {dimension_semantics = [#tpu.dimension_semantics<parallel>], iteration_bounds = array<i64: 2>, scalar_prefetch = 0 : i64, scratch_operands = 0 : i64, tpu.core_type = #tpu.core_type<tc>, window_params = [{pipeline_mode = #tpu.pipeline_mode<synchronous>, transform_indices = @transform_0, window_bounds = array<i64: 32, 4>}, {pipeline_mode = #tpu.pipeline_mode<synchronous>, transform_indices = @transform_1, window_bounds = array<i64: 4, 32>}, {pipeline_mode = #tpu.pipeline_mode<synchronous>, transform_indices = @transform_2, window_bounds = array<i64: 7, 256>}, {transform_indices = @transform_3, window_bounds = array<i64: 98>}, {transform_indices = @transform_4, window_bounds = array<i64: 1, 32, 256>}, {transform_indices = @transform_5, window_bounds = array<i64: 1, 32, 256>}]} {
    %c0 = arith.constant 0 : index
    %c0_0 = arith.constant 0 : index
    %c0_1 = arith.constant 0 : index
    %0 = vector.load %arg5[%c0, %c0_0, %c0_1] : memref<1x32x256xf32, #tpu.memory_space<vmem>>, vector<1x32x256xf32>
    %cst = arith.constant dense<0.000000e+00> : vector<1x32xf32>
    %1 = vector.multi_reduction <add>, %0, %cst [2] : vector<1x32x256xf32> to vector<1x32xf32>
    %cst_2 = arith.constant 3.906250e-03 : f32
    %2 = vector.broadcast %cst_2 : f32 to vector<1x32xf32>
    %3 = arith.mulf %1, %2 : vector<1x32xf32>
    %c0_3 = arith.constant 0 : index
    %c0_4 = arith.constant 0 : index
    %c0_5 = arith.constant 0 : index
    %4 = vector.load %arg5[%c0_3, %c0_4, %c0_5] : memref<1x32x256xf32, #tpu.memory_space<vmem>>, vector<1x32x256xf32>
    %cst_6 = arith.constant dense<0xFF800000> : vector<1x32xf32>
    %5 = vector.multi_reduction <maximumf>, %4, %cst_6 [2] : vector<1x32x256xf32> to vector<1x32xf32>
    %6 = tpu.concatenate %3, %5 in 0 : vector<1x32xf32>, vector<1x32xf32> -> vector<2x32xf32>
    %c0_7 = arith.constant 0 : index
    %c0_8 = arith.constant 0 : index
    %7 = vector.load %arg1[%c0_7, %c0_8] : memref<32x4xf32, #tpu.memory_space<vmem>>, vector<32x4xf32>
    %cst_9 = arith.constant dense<0.000000e+00> : vector<2x4xf32>
    %8 = tpu.matmul %6, %7, %cst_9 {dimension_numbers = #tpu.dot_dimension_numbers<[1], [0], [0], [1], [0, 0, 1, 1], [], []>, precision = #tpu.contract_precision<fp32>} : vector<2x32xf32>, vector<32x4xf32>, vector<2x4xf32> -> vector<2x4xf32>
    %cst_10 = arith.constant 0.000000e+00 : f32
    %9 = vector.broadcast %cst_10 : f32 to vector<2x4xf32>
    %10 = arith.maximumf %8, %9 : vector<2x4xf32>
    %c0_11 = arith.constant 0 : index
    %c0_12 = arith.constant 0 : index
    %11 = vector.load %arg2[%c0_11, %c0_12] : memref<4x32xf32, #tpu.memory_space<vmem>>, vector<4x32xf32>
    %cst_13 = arith.constant dense<0.000000e+00> : vector<2x32xf32>
    %12 = tpu.matmul %10, %11, %cst_13 {dimension_numbers = #tpu.dot_dimension_numbers<[1], [0], [0], [1], [0, 0, 1, 1], [], []>, precision = #tpu.contract_precision<fp32>} : vector<2x4xf32>, vector<4x32xf32>, vector<2x32xf32> -> vector<2x32xf32>
    %13 = vector.extract_strided_slice %12 {offsets = [0, 0], sizes = [1, 32], strides = [1, 1]} : vector<2x32xf32> to vector<1x32xf32>
    %14 = vector.extract_strided_slice %12 {offsets = [1, 0], sizes = [1, 32], strides = [1, 1]} : vector<2x32xf32> to vector<1x32xf32>
    %15 = arith.addf %13, %14 : vector<1x32xf32>
    %16 = arith.negf %15 : vector<1x32xf32>
    %17 = math.exp %16 : vector<1x32xf32>
    %cst_14 = arith.constant 1.000000e+00 : f32
    %18 = vector.broadcast %cst_14 : f32 to vector<1x32xf32>
    %19 = arith.addf %18, %17 : vector<1x32xf32>
    %20 = arith.divf %18, %19 : vector<1x32xf32>
    %21 = vector.shape_cast %20 : vector<1x32xf32> to vector<1x32x1xf32>
    %c0_15 = arith.constant 0 : index
    %c0_16 = arith.constant 0 : index
    %c0_17 = arith.constant 0 : index
    %22 = vector.load %arg5[%c0_15, %c0_16, %c0_17] : memref<1x32x256xf32, #tpu.memory_space<vmem>>, vector<1x32x256xf32>
    %23 = vector.broadcast %21 : vector<1x32x1xf32> to vector<1x32x256xf32>
    %24 = arith.mulf %22, %23 : vector<1x32x256xf32>
    %cst_18 = arith.constant dense<0.000000e+00> : vector<1x256xf32>
    %25 = vector.multi_reduction <add>, %24, %cst_18 [1] : vector<1x32x256xf32> to vector<1x256xf32>
    %cst_19 = arith.constant 3.125000e-02 : f32
    %26 = vector.broadcast %cst_19 : f32 to vector<1x256xf32>
    %27 = arith.mulf %25, %26 : vector<1x256xf32>
    %c0_20 = arith.constant 0 : index
    %c0_21 = arith.constant 0 : index
    %c0_22 = arith.constant 0 : index
    %28 = vector.load %arg5[%c0_20, %c0_21, %c0_22] : memref<1x32x256xf32, #tpu.memory_space<vmem>>, vector<1x32x256xf32>
    %29 = vector.broadcast %21 : vector<1x32x1xf32> to vector<1x32x256xf32>
    %30 = arith.mulf %28, %29 : vector<1x32x256xf32>
    %cst_23 = arith.constant dense<0xFF800000> : vector<1x256xf32>
    %31 = vector.multi_reduction <maximumf>, %30, %cst_23 [1] : vector<1x32x256xf32> to vector<1x256xf32>
    %32 = tpu.concatenate %27, %31 in 0 : vector<1x256xf32>, vector<1x256xf32> -> vector<2x256xf32>
    %cst_24 = arith.constant 0.000000e+00 : f32
    %33 = vector.broadcast %cst_24 : f32 to vector<2x51xf32>
    %34 = tpu.concatenate %33, %32, %33 in 1 : vector<2x51xf32>, vector<2x256xf32>, vector<2x51xf32> -> vector<2x358xf32>
    %c0_25 = arith.constant 0 : index
    %c0_26 = arith.constant 0 : index
    %35 = vector.load %arg3[%c0_25, %c0_26] : memref<7x256xf32, #tpu.memory_space<vmem>>, vector<7x256xf32>
    %c0_27 = arith.constant 0 : index
    %36 = memref.load %arg4[%c0_27] : memref<98xf32, #tpu.memory_space<smem>>
    %c1 = arith.constant 1 : index
    %37 = memref.load %arg4[%c1] : memref<98xf32, #tpu.memory_space<smem>>
    %c2 = arith.constant 2 : index
    %38 = memref.load %arg4[%c2] : memref<98xf32, #tpu.memory_space<smem>>
    %c3 = arith.constant 3 : index
    %39 = memref.load %arg4[%c3] : memref<98xf32, #tpu.memory_space<smem>>
    %c4 = arith.constant 4 : index
    %40 = memref.load %arg4[%c4] : memref<98xf32, #tpu.memory_space<smem>>
    %c5 = arith.constant 5 : index
    %41 = memref.load %arg4[%c5] : memref<98xf32, #tpu.memory_space<smem>>
    %c6 = arith.constant 6 : index
    %42 = memref.load %arg4[%c6] : memref<98xf32, #tpu.memory_space<smem>>
    %c7 = arith.constant 7 : index
    %43 = memref.load %arg4[%c7] : memref<98xf32, #tpu.memory_space<smem>>
    %c8 = arith.constant 8 : index
    %44 = memref.load %arg4[%c8] : memref<98xf32, #tpu.memory_space<smem>>
    %c9 = arith.constant 9 : index
    %45 = memref.load %arg4[%c9] : memref<98xf32, #tpu.memory_space<smem>>
    %c10 = arith.constant 10 : index
    %46 = memref.load %arg4[%c10] : memref<98xf32, #tpu.memory_space<smem>>
    %c11 = arith.constant 11 : index
    %47 = memref.load %arg4[%c11] : memref<98xf32, #tpu.memory_space<smem>>
    %c12 = arith.constant 12 : index
    %48 = memref.load %arg4[%c12] : memref<98xf32, #tpu.memory_space<smem>>
    %c13 = arith.constant 13 : index
    %49 = memref.load %arg4[%c13] : memref<98xf32, #tpu.memory_space<smem>>
    %c14 = arith.constant 14 : index
    %50 = memref.load %arg4[%c14] : memref<98xf32, #tpu.memory_space<smem>>
    %c15 = arith.constant 15 : index
    %51 = memref.load %arg4[%c15] : memref<98xf32, #tpu.memory_space<smem>>
    %c16 = arith.constant 16 : index
    %52 = memref.load %arg4[%c16] : memref<98xf32, #tpu.memory_space<smem>>
    %c17 = arith.constant 17 : index
    %53 = memref.load %arg4[%c17] : memref<98xf32, #tpu.memory_space<smem>>
    %c18 = arith.constant 18 : index
    %54 = memref.load %arg4[%c18] : memref<98xf32, #tpu.memory_space<smem>>
    %c19 = arith.constant 19 : index
    %55 = memref.load %arg4[%c19] : memref<98xf32, #tpu.memory_space<smem>>
    %c20 = arith.constant 20 : index
    %56 = memref.load %arg4[%c20] : memref<98xf32, #tpu.memory_space<smem>>
    %c21 = arith.constant 21 : index
    %57 = memref.load %arg4[%c21] : memref<98xf32, #tpu.memory_space<smem>>
    %c22 = arith.constant 22 : index
    %58 = memref.load %arg4[%c22] : memref<98xf32, #tpu.memory_space<smem>>
    %c23 = arith.constant 23 : index
    %59 = memref.load %arg4[%c23] : memref<98xf32, #tpu.memory_space<smem>>
    %c24 = arith.constant 24 : index
    %60 = memref.load %arg4[%c24] : memref<98xf32, #tpu.memory_space<smem>>
    %c25 = arith.constant 25 : index
    %61 = memref.load %arg4[%c25] : memref<98xf32, #tpu.memory_space<smem>>
    %c26 = arith.constant 26 : index
    %62 = memref.load %arg4[%c26] : memref<98xf32, #tpu.memory_space<smem>>
    %c27 = arith.constant 27 : index
    %63 = memref.load %arg4[%c27] : memref<98xf32, #tpu.memory_space<smem>>
    %c28 = arith.constant 28 : index
    %64 = memref.load %arg4[%c28] : memref<98xf32, #tpu.memory_space<smem>>
    %c29 = arith.constant 29 : index
    %65 = memref.load %arg4[%c29] : memref<98xf32, #tpu.memory_space<smem>>
    %c30 = arith.constant 30 : index
    %66 = memref.load %arg4[%c30] : memref<98xf32, #tpu.memory_space<smem>>
    %c31 = arith.constant 31 : index
    %67 = memref.load %arg4[%c31] : memref<98xf32, #tpu.memory_space<smem>>
    %c32 = arith.constant 32 : index
    %68 = memref.load %arg4[%c32] : memref<98xf32, #tpu.memory_space<smem>>
    %c33 = arith.constant 33 : index
    %69 = memref.load %arg4[%c33] : memref<98xf32, #tpu.memory_space<smem>>
    %c34 = arith.constant 34 : index
    %70 = memref.load %arg4[%c34] : memref<98xf32, #tpu.memory_space<smem>>
    %c35 = arith.constant 35 : index
    %71 = memref.load %arg4[%c35] : memref<98xf32, #tpu.memory_space<smem>>
    %c36 = arith.constant 36 : index
    %72 = memref.load %arg4[%c36] : memref<98xf32, #tpu.memory_space<smem>>
    %c37 = arith.constant 37 : index
    %73 = memref.load %arg4[%c37] : memref<98xf32, #tpu.memory_space<smem>>
    %c38 = arith.constant 38 : index
    %74 = memref.load %arg4[%c38] : memref<98xf32, #tpu.memory_space<smem>>
    %c39 = arith.constant 39 : index
    %75 = memref.load %arg4[%c39] : memref<98xf32, #tpu.memory_space<smem>>
    %c40 = arith.constant 40 : index
    %76 = memref.load %arg4[%c40] : memref<98xf32, #tpu.memory_space<smem>>
    %c41 = arith.constant 41 : index
    %77 = memref.load %arg4[%c41] : memref<98xf32, #tpu.memory_space<smem>>
    %c42 = arith.constant 42 : index
    %78 = memref.load %arg4[%c42] : memref<98xf32, #tpu.memory_space<smem>>
    %c43 = arith.constant 43 : index
    %79 = memref.load %arg4[%c43] : memref<98xf32, #tpu.memory_space<smem>>
    %c44 = arith.constant 44 : index
    %80 = memref.load %arg4[%c44] : memref<98xf32, #tpu.memory_space<smem>>
    %c45 = arith.constant 45 : index
    %81 = memref.load %arg4[%c45] : memref<98xf32, #tpu.memory_space<smem>>
    %c46 = arith.constant 46 : index
    %82 = memref.load %arg4[%c46] : memref<98xf32, #tpu.memory_space<smem>>
    %c47 = arith.constant 47 : index
    %83 = memref.load %arg4[%c47] : memref<98xf32, #tpu.memory_space<smem>>
    %c48 = arith.constant 48 : index
    %84 = memref.load %arg4[%c48] : memref<98xf32, #tpu.memory_space<smem>>
    %c49 = arith.constant 49 : index
    %85 = memref.load %arg4[%c49] : memref<98xf32, #tpu.memory_space<smem>>
    %c50 = arith.constant 50 : index
    %86 = memref.load %arg4[%c50] : memref<98xf32, #tpu.memory_space<smem>>
    %c51 = arith.constant 51 : index
    %87 = memref.load %arg4[%c51] : memref<98xf32, #tpu.memory_space<smem>>
    %c52 = arith.constant 52 : index
    %88 = memref.load %arg4[%c52] : memref<98xf32, #tpu.memory_space<smem>>
    %c53 = arith.constant 53 : index
    %89 = memref.load %arg4[%c53] : memref<98xf32, #tpu.memory_space<smem>>
    %c54 = arith.constant 54 : index
    %90 = memref.load %arg4[%c54] : memref<98xf32, #tpu.memory_space<smem>>
    %c55 = arith.constant 55 : index
    %91 = memref.load %arg4[%c55] : memref<98xf32, #tpu.memory_space<smem>>
    %c56 = arith.constant 56 : index
    %92 = memref.load %arg4[%c56] : memref<98xf32, #tpu.memory_space<smem>>
    %c57 = arith.constant 57 : index
    %93 = memref.load %arg4[%c57] : memref<98xf32, #tpu.memory_space<smem>>
    %c58 = arith.constant 58 : index
    %94 = memref.load %arg4[%c58] : memref<98xf32, #tpu.memory_space<smem>>
    %c59 = arith.constant 59 : index
    %95 = memref.load %arg4[%c59] : memref<98xf32, #tpu.memory_space<smem>>
    %c60 = arith.constant 60 : index
    %96 = memref.load %arg4[%c60] : memref<98xf32, #tpu.memory_space<smem>>
    %c61 = arith.constant 61 : index
    %97 = memref.load %arg4[%c61] : memref<98xf32, #tpu.memory_space<smem>>
    %c62 = arith.constant 62 : index
    %98 = memref.load %arg4[%c62] : memref<98xf32, #tpu.memory_space<smem>>
    %c63 = arith.constant 63 : index
    %99 = memref.load %arg4[%c63] : memref<98xf32, #tpu.memory_space<smem>>
    %c64 = arith.constant 64 : index
    %100 = memref.load %arg4[%c64] : memref<98xf32, #tpu.memory_space<smem>>
    %c65 = arith.constant 65 : index
    %101 = memref.load %arg4[%c65] : memref<98xf32, #tpu.memory_space<smem>>
    %c66 = arith.constant 66 : index
    %102 = memref.load %arg4[%c66] : memref<98xf32, #tpu.memory_space<smem>>
    %c67 = arith.constant 67 : index
    %103 = memref.load %arg4[%c67] : memref<98xf32, #tpu.memory_space<smem>>
    %c68 = arith.constant 68 : index
    %104 = memref.load %arg4[%c68] : memref<98xf32, #tpu.memory_space<smem>>
    %c69 = arith.constant 69 : index
    %105 = memref.load %arg4[%c69] : memref<98xf32, #tpu.memory_space<smem>>
    %c70 = arith.constant 70 : index
    %106 = memref.load %arg4[%c70] : memref<98xf32, #tpu.memory_space<smem>>
    %c71 = arith.constant 71 : index
    %107 = memref.load %arg4[%c71] : memref<98xf32, #tpu.memory_space<smem>>
    %c72 = arith.constant 72 : index
    %108 = memref.load %arg4[%c72] : memref<98xf32, #tpu.memory_space<smem>>
    %c73 = arith.constant 73 : index
    %109 = memref.load %arg4[%c73] : memref<98xf32, #tpu.memory_space<smem>>
    %c74 = arith.constant 74 : index
    %110 = memref.load %arg4[%c74] : memref<98xf32, #tpu.memory_space<smem>>
    %c75 = arith.constant 75 : index
    %111 = memref.load %arg4[%c75] : memref<98xf32, #tpu.memory_space<smem>>
    %c76 = arith.constant 76 : index
    %112 = memref.load %arg4[%c76] : memref<98xf32, #tpu.memory_space<smem>>
    %c77 = arith.constant 77 : index
    %113 = memref.load %arg4[%c77] : memref<98xf32, #tpu.memory_space<smem>>
    %c78 = arith.constant 78 : index
    %114 = memref.load %arg4[%c78] : memref<98xf32, #tpu.memory_space<smem>>
    %c79 = arith.constant 79 : index
    %115 = memref.load %arg4[%c79] : memref<98xf32, #tpu.memory_space<smem>>
    %c80 = arith.constant 80 : index
    %116 = memref.load %arg4[%c80] : memref<98xf32, #tpu.memory_space<smem>>
    %c81 = arith.constant 81 : index
    %117 = memref.load %arg4[%c81] : memref<98xf32, #tpu.memory_space<smem>>
    %c82 = arith.constant 82 : index
    %118 = memref.load %arg4[%c82] : memref<98xf32, #tpu.memory_space<smem>>
    %c83 = arith.constant 83 : index
    %119 = memref.load %arg4[%c83] : memref<98xf32, #tpu.memory_space<smem>>
    %c84 = arith.constant 84 : index
    %120 = memref.load %arg4[%c84] : memref<98xf32, #tpu.memory_space<smem>>
    %c85 = arith.constant 85 : index
    %121 = memref.load %arg4[%c85] : memref<98xf32, #tpu.memory_space<smem>>
    %c86 = arith.constant 86 : index
    %122 = memref.load %arg4[%c86] : memref<98xf32, #tpu.memory_space<smem>>
    %c87 = arith.constant 87 : index
    %123 = memref.load %arg4[%c87] : memref<98xf32, #tpu.memory_space<smem>>
    %c88 = arith.constant 88 : index
    %124 = memref.load %arg4[%c88] : memref<98xf32, #tpu.memory_space<smem>>
    %c89 = arith.constant 89 : index
    %125 = memref.load %arg4[%c89] : memref<98xf32, #tpu.memory_space<smem>>
    %c90 = arith.constant 90 : index
    %126 = memref.load %arg4[%c90] : memref<98xf32, #tpu.memory_space<smem>>
    %c91 = arith.constant 91 : index
    %127 = memref.load %arg4[%c91] : memref<98xf32, #tpu.memory_space<smem>>
    %c92 = arith.constant 92 : index
    %128 = memref.load %arg4[%c92] : memref<98xf32, #tpu.memory_space<smem>>
    %c93 = arith.constant 93 : index
    %129 = memref.load %arg4[%c93] : memref<98xf32, #tpu.memory_space<smem>>
    %c94 = arith.constant 94 : index
    %130 = memref.load %arg4[%c94] : memref<98xf32, #tpu.memory_space<smem>>
    %c95 = arith.constant 95 : index
    %131 = memref.load %arg4[%c95] : memref<98xf32, #tpu.memory_space<smem>>
    %c96 = arith.constant 96 : index
    %132 = memref.load %arg4[%c96] : memref<98xf32, #tpu.memory_space<smem>>
    %c97 = arith.constant 97 : index
    %133 = memref.load %arg4[%c97] : memref<98xf32, #tpu.memory_space<smem>>
    %134 = tpu.iota {dimensions = array<i32: 0>} : vector<2x1xi32>
    %c1_i32 = arith.constant 1 : i32
    %135 = vector.broadcast %c1_i32 : i32 to vector<2x1xi32>
    %136 = arith.cmpi slt, %134, %135 : vector<2x1xi32>
    %137 = vector.broadcast %36 : f32 to vector<2x1xf32>
    %138 = vector.broadcast %85 : f32 to vector<2x1xf32>
    %139 = arith.select %136, %137, %138 : vector<2x1xi1>, vector<2x1xf32>
    %140 = vector.extract_strided_slice %34 {offsets = [0, 0], sizes = [2, 256], strides = [1, 1]} : vector<2x358xf32> to vector<2x256xf32>
    %141 = vector.broadcast %139 : vector<2x1xf32> to vector<2x256xf32>
    %142 = arith.mulf %141, %140 : vector<2x256xf32>
    %143 = vector.broadcast %43 : f32 to vector<2x1xf32>
    %144 = vector.broadcast %92 : f32 to vector<2x1xf32>
    %145 = arith.select %136, %143, %144 : vector<2x1xi1>, vector<2x1xf32>
    %146 = vector.extract_strided_slice %34 {offsets = [0, 16], sizes = [2, 256], strides = [1, 1]} : vector<2x358xf32> to vector<2x256xf32>
    %147 = vector.broadcast %145 : vector<2x1xf32> to vector<2x256xf32>
    %148 = arith.mulf %147, %146 : vector<2x256xf32>
    %149 = arith.addf %142, %148 : vector<2x256xf32>
    %150 = vector.broadcast %50 : f32 to vector<2x1xf32>
    %151 = vector.broadcast %99 : f32 to vector<2x1xf32>
    %152 = arith.select %136, %150, %151 : vector<2x1xi1>, vector<2x1xf32>
    %153 = vector.extract_strided_slice %34 {offsets = [0, 32], sizes = [2, 256], strides = [1, 1]} : vector<2x358xf32> to vector<2x256xf32>
    %154 = vector.broadcast %152 : vector<2x1xf32> to vector<2x256xf32>
    %155 = arith.mulf %154, %153 : vector<2x256xf32>
    %156 = arith.addf %149, %155 : vector<2x256xf32>
    %157 = vector.broadcast %57 : f32 to vector<2x1xf32>
    %158 = vector.broadcast %106 : f32 to vector<2x1xf32>
    %159 = arith.select %136, %157, %158 : vector<2x1xi1>, vector<2x1xf32>
    %160 = vector.extract_strided_slice %34 {offsets = [0, 48], sizes = [2, 256], strides = [1, 1]} : vector<2x358xf32> to vector<2x256xf32>
    %161 = vector.broadcast %159 : vector<2x1xf32> to vector<2x256xf32>
    %162 = arith.mulf %161, %160 : vector<2x256xf32>
    %163 = arith.addf %156, %162 : vector<2x256xf32>
    %164 = vector.broadcast %64 : f32 to vector<2x1xf32>
    %165 = vector.broadcast %113 : f32 to vector<2x1xf32>
    %166 = arith.select %136, %164, %165 : vector<2x1xi1>, vector<2x1xf32>
    %167 = vector.extract_strided_slice %34 {offsets = [0, 64], sizes = [2, 256], strides = [1, 1]} : vector<2x358xf32> to vector<2x256xf32>
    %168 = vector.broadcast %166 : vector<2x1xf32> to vector<2x256xf32>
    %169 = arith.mulf %168, %167 : vector<2x256xf32>
    %170 = arith.addf %163, %169 : vector<2x256xf32>
    %171 = vector.broadcast %71 : f32 to vector<2x1xf32>
    %172 = vector.broadcast %120 : f32 to vector<2x1xf32>
    %173 = arith.select %136, %171, %172 : vector<2x1xi1>, vector<2x1xf32>
    %174 = vector.extract_strided_slice %34 {offsets = [0, 80], sizes = [2, 256], strides = [1, 1]} : vector<2x358xf32> to vector<2x256xf32>
    %175 = vector.broadcast %173 : vector<2x1xf32> to vector<2x256xf32>
    %176 = arith.mulf %175, %174 : vector<2x256xf32>
    %177 = arith.addf %170, %176 : vector<2x256xf32>
    %178 = vector.broadcast %78 : f32 to vector<2x1xf32>
    %179 = vector.broadcast %127 : f32 to vector<2x1xf32>
    %180 = arith.select %136, %178, %179 : vector<2x1xi1>, vector<2x1xf32>
    %181 = vector.extract_strided_slice %34 {offsets = [0, 96], sizes = [2, 256], strides = [1, 1]} : vector<2x358xf32> to vector<2x256xf32>
    %182 = vector.broadcast %180 : vector<2x1xf32> to vector<2x256xf32>
    %183 = arith.mulf %182, %181 : vector<2x256xf32>
    %184 = arith.addf %177, %183 : vector<2x256xf32>
    %185 = vector.extract_strided_slice %35 {offsets = [0, 0], sizes = [1, 256], strides = [1, 1]} : vector<7x256xf32> to vector<1x256xf32>
    %186 = vector.broadcast %185 : vector<1x256xf32> to vector<2x256xf32>
    %187 = arith.mulf %186, %184 : vector<2x256xf32>
    %188 = vector.broadcast %37 : f32 to vector<2x1xf32>
    %189 = vector.broadcast %86 : f32 to vector<2x1xf32>
    %190 = arith.select %136, %188, %189 : vector<2x1xi1>, vector<2x1xf32>
    %191 = vector.extract_strided_slice %34 {offsets = [0, 1], sizes = [2, 256], strides = [1, 1]} : vector<2x358xf32> to vector<2x256xf32>
    %192 = vector.broadcast %190 : vector<2x1xf32> to vector<2x256xf32>
    %193 = arith.mulf %192, %191 : vector<2x256xf32>
    %194 = vector.broadcast %44 : f32 to vector<2x1xf32>
    %195 = vector.broadcast %93 : f32 to vector<2x1xf32>
    %196 = arith.select %136, %194, %195 : vector<2x1xi1>, vector<2x1xf32>
    %197 = vector.extract_strided_slice %34 {offsets = [0, 17], sizes = [2, 256], strides = [1, 1]} : vector<2x358xf32> to vector<2x256xf32>
    %198 = vector.broadcast %196 : vector<2x1xf32> to vector<2x256xf32>
    %199 = arith.mulf %198, %197 : vector<2x256xf32>
    %200 = arith.addf %193, %199 : vector<2x256xf32>
    %201 = vector.broadcast %51 : f32 to vector<2x1xf32>
    %202 = vector.broadcast %100 : f32 to vector<2x1xf32>
    %203 = arith.select %136, %201, %202 : vector<2x1xi1>, vector<2x1xf32>
    %204 = vector.extract_strided_slice %34 {offsets = [0, 33], sizes = [2, 256], strides = [1, 1]} : vector<2x358xf32> to vector<2x256xf32>
    %205 = vector.broadcast %203 : vector<2x1xf32> to vector<2x256xf32>
    %206 = arith.mulf %205, %204 : vector<2x256xf32>
    %207 = arith.addf %200, %206 : vector<2x256xf32>
    %208 = vector.broadcast %58 : f32 to vector<2x1xf32>
    %209 = vector.broadcast %107 : f32 to vector<2x1xf32>
    %210 = arith.select %136, %208, %209 : vector<2x1xi1>, vector<2x1xf32>
    %211 = vector.extract_strided_slice %34 {offsets = [0, 49], sizes = [2, 256], strides = [1, 1]} : vector<2x358xf32> to vector<2x256xf32>
    %212 = vector.broadcast %210 : vector<2x1xf32> to vector<2x256xf32>
    %213 = arith.mulf %212, %211 : vector<2x256xf32>
    %214 = arith.addf %207, %213 : vector<2x256xf32>
    %215 = vector.broadcast %65 : f32 to vector<2x1xf32>
    %216 = vector.broadcast %114 : f32 to vector<2x1xf32>
    %217 = arith.select %136, %215, %216 : vector<2x1xi1>, vector<2x1xf32>
    %218 = vector.extract_strided_slice %34 {offsets = [0, 65], sizes = [2, 256], strides = [1, 1]} : vector<2x358xf32> to vector<2x256xf32>
    %219 = vector.broadcast %217 : vector<2x1xf32> to vector<2x256xf32>
    %220 = arith.mulf %219, %218 : vector<2x256xf32>
    %221 = arith.addf %214, %220 : vector<2x256xf32>
    %222 = vector.broadcast %72 : f32 to vector<2x1xf32>
    %223 = vector.broadcast %121 : f32 to vector<2x1xf32>
    %224 = arith.select %136, %222, %223 : vector<2x1xi1>, vector<2x1xf32>
    %225 = vector.extract_strided_slice %34 {offsets = [0, 81], sizes = [2, 256], strides = [1, 1]} : vector<2x358xf32> to vector<2x256xf32>
    %226 = vector.broadcast %224 : vector<2x1xf32> to vector<2x256xf32>
    %227 = arith.mulf %226, %225 : vector<2x256xf32>
    %228 = arith.addf %221, %227 : vector<2x256xf32>
    %229 = vector.broadcast %79 : f32 to vector<2x1xf32>
    %230 = vector.broadcast %128 : f32 to vector<2x1xf32>
    %231 = arith.select %136, %229, %230 : vector<2x1xi1>, vector<2x1xf32>
    %232 = vector.extract_strided_slice %34 {offsets = [0, 97], sizes = [2, 256], strides = [1, 1]} : vector<2x358xf32> to vector<2x256xf32>
    %233 = vector.broadcast %231 : vector<2x1xf32> to vector<2x256xf32>
    %234 = arith.mulf %233, %232 : vector<2x256xf32>
    %235 = arith.addf %228, %234 : vector<2x256xf32>
    %236 = vector.extract_strided_slice %35 {offsets = [1, 0], sizes = [1, 256], strides = [1, 1]} : vector<7x256xf32> to vector<1x256xf32>
    %237 = vector.broadcast %236 : vector<1x256xf32> to vector<2x256xf32>
    %238 = arith.mulf %237, %235 : vector<2x256xf32>
    %239 = vector.broadcast %38 : f32 to vector<2x1xf32>
    %240 = vector.broadcast %87 : f32 to vector<2x1xf32>
    %241 = arith.select %136, %239, %240 : vector<2x1xi1>, vector<2x1xf32>
    %242 = vector.extract_strided_slice %34 {offsets = [0, 2], sizes = [2, 256], strides = [1, 1]} : vector<2x358xf32> to vector<2x256xf32>
    %243 = vector.broadcast %241 : vector<2x1xf32> to vector<2x256xf32>
    %244 = arith.mulf %243, %242 : vector<2x256xf32>
    %245 = vector.broadcast %45 : f32 to vector<2x1xf32>
    %246 = vector.broadcast %94 : f32 to vector<2x1xf32>
    %247 = arith.select %136, %245, %246 : vector<2x1xi1>, vector<2x1xf32>
    %248 = vector.extract_strided_slice %34 {offsets = [0, 18], sizes = [2, 256], strides = [1, 1]} : vector<2x358xf32> to vector<2x256xf32>
    %249 = vector.broadcast %247 : vector<2x1xf32> to vector<2x256xf32>
    %250 = arith.mulf %249, %248 : vector<2x256xf32>
    %251 = arith.addf %244, %250 : vector<2x256xf32>
    %252 = vector.broadcast %52 : f32 to vector<2x1xf32>
    %253 = vector.broadcast %101 : f32 to vector<2x1xf32>
    %254 = arith.select %136, %252, %253 : vector<2x1xi1>, vector<2x1xf32>
    %255 = vector.extract_strided_slice %34 {offsets = [0, 34], sizes = [2, 256], strides = [1, 1]} : vector<2x358xf32> to vector<2x256xf32>
    %256 = vector.broadcast %254 : vector<2x1xf32> to vector<2x256xf32>
    %257 = arith.mulf %256, %255 : vector<2x256xf32>
    %258 = arith.addf %251, %257 : vector<2x256xf32>
    %259 = vector.broadcast %59 : f32 to vector<2x1xf32>
    %260 = vector.broadcast %108 : f32 to vector<2x1xf32>
    %261 = arith.select %136, %259, %260 : vector<2x1xi1>, vector<2x1xf32>
    %262 = vector.extract_strided_slice %34 {offsets = [0, 50], sizes = [2, 256], strides = [1, 1]} : vector<2x358xf32> to vector<2x256xf32>
    %263 = vector.broadcast %261 : vector<2x1xf32> to vector<2x256xf32>
    %264 = arith.mulf %263, %262 : vector<2x256xf32>
    %265 = arith.addf %258, %264 : vector<2x256xf32>
    %266 = vector.broadcast %66 : f32 to vector<2x1xf32>
    %267 = vector.broadcast %115 : f32 to vector<2x1xf32>
    %268 = arith.select %136, %266, %267 : vector<2x1xi1>, vector<2x1xf32>
    %269 = vector.extract_strided_slice %34 {offsets = [0, 66], sizes = [2, 256], strides = [1, 1]} : vector<2x358xf32> to vector<2x256xf32>
    %270 = vector.broadcast %268 : vector<2x1xf32> to vector<2x256xf32>
    %271 = arith.mulf %270, %269 : vector<2x256xf32>
    %272 = arith.addf %265, %271 : vector<2x256xf32>
    %273 = vector.broadcast %73 : f32 to vector<2x1xf32>
    %274 = vector.broadcast %122 : f32 to vector<2x1xf32>
    %275 = arith.select %136, %273, %274 : vector<2x1xi1>, vector<2x1xf32>
    %276 = vector.extract_strided_slice %34 {offsets = [0, 82], sizes = [2, 256], strides = [1, 1]} : vector<2x358xf32> to vector<2x256xf32>
    %277 = vector.broadcast %275 : vector<2x1xf32> to vector<2x256xf32>
    %278 = arith.mulf %277, %276 : vector<2x256xf32>
    %279 = arith.addf %272, %278 : vector<2x256xf32>
    %280 = vector.broadcast %80 : f32 to vector<2x1xf32>
    %281 = vector.broadcast %129 : f32 to vector<2x1xf32>
    %282 = arith.select %136, %280, %281 : vector<2x1xi1>, vector<2x1xf32>
    %283 = vector.extract_strided_slice %34 {offsets = [0, 98], sizes = [2, 256], strides = [1, 1]} : vector<2x358xf32> to vector<2x256xf32>
    %284 = vector.broadcast %282 : vector<2x1xf32> to vector<2x256xf32>
    %285 = arith.mulf %284, %283 : vector<2x256xf32>
    %286 = arith.addf %279, %285 : vector<2x256xf32>
    %287 = vector.extract_strided_slice %35 {offsets = [2, 0], sizes = [1, 256], strides = [1, 1]} : vector<7x256xf32> to vector<1x256xf32>
    %288 = vector.broadcast %287 : vector<1x256xf32> to vector<2x256xf32>
    %289 = arith.mulf %288, %286 : vector<2x256xf32>
    %290 = vector.broadcast %39 : f32 to vector<2x1xf32>
    %291 = vector.broadcast %88 : f32 to vector<2x1xf32>
    %292 = arith.select %136, %290, %291 : vector<2x1xi1>, vector<2x1xf32>
    %293 = vector.extract_strided_slice %34 {offsets = [0, 3], sizes = [2, 256], strides = [1, 1]} : vector<2x358xf32> to vector<2x256xf32>
    %294 = vector.broadcast %292 : vector<2x1xf32> to vector<2x256xf32>
    %295 = arith.mulf %294, %293 : vector<2x256xf32>
    %296 = vector.broadcast %46 : f32 to vector<2x1xf32>
    %297 = vector.broadcast %95 : f32 to vector<2x1xf32>
    %298 = arith.select %136, %296, %297 : vector<2x1xi1>, vector<2x1xf32>
    %299 = vector.extract_strided_slice %34 {offsets = [0, 19], sizes = [2, 256], strides = [1, 1]} : vector<2x358xf32> to vector<2x256xf32>
    %300 = vector.broadcast %298 : vector<2x1xf32> to vector<2x256xf32>
    %301 = arith.mulf %300, %299 : vector<2x256xf32>
    %302 = arith.addf %295, %301 : vector<2x256xf32>
    %303 = vector.broadcast %53 : f32 to vector<2x1xf32>
    %304 = vector.broadcast %102 : f32 to vector<2x1xf32>
    %305 = arith.select %136, %303, %304 : vector<2x1xi1>, vector<2x1xf32>
    %306 = vector.extract_strided_slice %34 {offsets = [0, 35], sizes = [2, 256], strides = [1, 1]} : vector<2x358xf32> to vector<2x256xf32>
    %307 = vector.broadcast %305 : vector<2x1xf32> to vector<2x256xf32>
    %308 = arith.mulf %307, %306 : vector<2x256xf32>
    %309 = arith.addf %302, %308 : vector<2x256xf32>
    %310 = vector.broadcast %60 : f32 to vector<2x1xf32>
    %311 = vector.broadcast %109 : f32 to vector<2x1xf32>
    %312 = arith.select %136, %310, %311 : vector<2x1xi1>, vector<2x1xf32>
    %313 = vector.extract_strided_slice %34 {offsets = [0, 51], sizes = [2, 256], strides = [1, 1]} : vector<2x358xf32> to vector<2x256xf32>
    %314 = vector.broadcast %312 : vector<2x1xf32> to vector<2x256xf32>
    %315 = arith.mulf %314, %313 : vector<2x256xf32>
    %316 = arith.addf %309, %315 : vector<2x256xf32>
    %317 = vector.broadcast %67 : f32 to vector<2x1xf32>
    %318 = vector.broadcast %116 : f32 to vector<2x1xf32>
    %319 = arith.select %136, %317, %318 : vector<2x1xi1>, vector<2x1xf32>
    %320 = vector.extract_strided_slice %34 {offsets = [0, 67], sizes = [2, 256], strides = [1, 1]} : vector<2x358xf32> to vector<2x256xf32>
    %321 = vector.broadcast %319 : vector<2x1xf32> to vector<2x256xf32>
    %322 = arith.mulf %321, %320 : vector<2x256xf32>
    %323 = arith.addf %316, %322 : vector<2x256xf32>
    %324 = vector.broadcast %74 : f32 to vector<2x1xf32>
    %325 = vector.broadcast %123 : f32 to vector<2x1xf32>
    %326 = arith.select %136, %324, %325 : vector<2x1xi1>, vector<2x1xf32>
    %327 = vector.extract_strided_slice %34 {offsets = [0, 83], sizes = [2, 256], strides = [1, 1]} : vector<2x358xf32> to vector<2x256xf32>
    %328 = vector.broadcast %326 : vector<2x1xf32> to vector<2x256xf32>
    %329 = arith.mulf %328, %327 : vector<2x256xf32>
    %330 = arith.addf %323, %329 : vector<2x256xf32>
    %331 = vector.broadcast %81 : f32 to vector<2x1xf32>
    %332 = vector.broadcast %130 : f32 to vector<2x1xf32>
    %333 = arith.select %136, %331, %332 : vector<2x1xi1>, vector<2x1xf32>
    %334 = vector.extract_strided_slice %34 {offsets = [0, 99], sizes = [2, 256], strides = [1, 1]} : vector<2x358xf32> to vector<2x256xf32>
    %335 = vector.broadcast %333 : vector<2x1xf32> to vector<2x256xf32>
    %336 = arith.mulf %335, %334 : vector<2x256xf32>
    %337 = arith.addf %330, %336 : vector<2x256xf32>
    %338 = vector.extract_strided_slice %35 {offsets = [3, 0], sizes = [1, 256], strides = [1, 1]} : vector<7x256xf32> to vector<1x256xf32>
    %339 = vector.broadcast %338 : vector<1x256xf32> to vector<2x256xf32>
    %340 = arith.mulf %339, %337 : vector<2x256xf32>
    %341 = vector.broadcast %40 : f32 to vector<2x1xf32>
    %342 = vector.broadcast %89 : f32 to vector<2x1xf32>
    %343 = arith.select %136, %341, %342 : vector<2x1xi1>, vector<2x1xf32>
    %344 = vector.extract_strided_slice %34 {offsets = [0, 4], sizes = [2, 256], strides = [1, 1]} : vector<2x358xf32> to vector<2x256xf32>
    %345 = vector.broadcast %343 : vector<2x1xf32> to vector<2x256xf32>
    %346 = arith.mulf %345, %344 : vector<2x256xf32>
    %347 = vector.broadcast %47 : f32 to vector<2x1xf32>
    %348 = vector.broadcast %96 : f32 to vector<2x1xf32>
    %349 = arith.select %136, %347, %348 : vector<2x1xi1>, vector<2x1xf32>
    %350 = vector.extract_strided_slice %34 {offsets = [0, 20], sizes = [2, 256], strides = [1, 1]} : vector<2x358xf32> to vector<2x256xf32>
    %351 = vector.broadcast %349 : vector<2x1xf32> to vector<2x256xf32>
    %352 = arith.mulf %351, %350 : vector<2x256xf32>
    %353 = arith.addf %346, %352 : vector<2x256xf32>
    %354 = vector.broadcast %54 : f32 to vector<2x1xf32>
    %355 = vector.broadcast %103 : f32 to vector<2x1xf32>
    %356 = arith.select %136, %354, %355 : vector<2x1xi1>, vector<2x1xf32>
    %357 = vector.extract_strided_slice %34 {offsets = [0, 36], sizes = [2, 256], strides = [1, 1]} : vector<2x358xf32> to vector<2x256xf32>
    %358 = vector.broadcast %356 : vector<2x1xf32> to vector<2x256xf32>
    %359 = arith.mulf %358, %357 : vector<2x256xf32>
    %360 = arith.addf %353, %359 : vector<2x256xf32>
    %361 = vector.broadcast %61 : f32 to vector<2x1xf32>
    %362 = vector.broadcast %110 : f32 to vector<2x1xf32>
    %363 = arith.select %136, %361, %362 : vector<2x1xi1>, vector<2x1xf32>
    %364 = vector.extract_strided_slice %34 {offsets = [0, 52], sizes = [2, 256], strides = [1, 1]} : vector<2x358xf32> to vector<2x256xf32>
    %365 = vector.broadcast %363 : vector<2x1xf32> to vector<2x256xf32>
    %366 = arith.mulf %365, %364 : vector<2x256xf32>
    %367 = arith.addf %360, %366 : vector<2x256xf32>
    %368 = vector.broadcast %68 : f32 to vector<2x1xf32>
    %369 = vector.broadcast %117 : f32 to vector<2x1xf32>
    %370 = arith.select %136, %368, %369 : vector<2x1xi1>, vector<2x1xf32>
    %371 = vector.extract_strided_slice %34 {offsets = [0, 68], sizes = [2, 256], strides = [1, 1]} : vector<2x358xf32> to vector<2x256xf32>
    %372 = vector.broadcast %370 : vector<2x1xf32> to vector<2x256xf32>
    %373 = arith.mulf %372, %371 : vector<2x256xf32>
    %374 = arith.addf %367, %373 : vector<2x256xf32>
    %375 = vector.broadcast %75 : f32 to vector<2x1xf32>
    %376 = vector.broadcast %124 : f32 to vector<2x1xf32>
    %377 = arith.select %136, %375, %376 : vector<2x1xi1>, vector<2x1xf32>
    %378 = vector.extract_strided_slice %34 {offsets = [0, 84], sizes = [2, 256], strides = [1, 1]} : vector<2x358xf32> to vector<2x256xf32>
    %379 = vector.broadcast %377 : vector<2x1xf32> to vector<2x256xf32>
    %380 = arith.mulf %379, %378 : vector<2x256xf32>
    %381 = arith.addf %374, %380 : vector<2x256xf32>
    %382 = vector.broadcast %82 : f32 to vector<2x1xf32>
    %383 = vector.broadcast %131 : f32 to vector<2x1xf32>
    %384 = arith.select %136, %382, %383 : vector<2x1xi1>, vector<2x1xf32>
    %385 = vector.extract_strided_slice %34 {offsets = [0, 100], sizes = [2, 256], strides = [1, 1]} : vector<2x358xf32> to vector<2x256xf32>
    %386 = vector.broadcast %384 : vector<2x1xf32> to vector<2x256xf32>
    %387 = arith.mulf %386, %385 : vector<2x256xf32>
    %388 = arith.addf %381, %387 : vector<2x256xf32>
    %389 = vector.extract_strided_slice %35 {offsets = [4, 0], sizes = [1, 256], strides = [1, 1]} : vector<7x256xf32> to vector<1x256xf32>
    %390 = vector.broadcast %389 : vector<1x256xf32> to vector<2x256xf32>
    %391 = arith.mulf %390, %388 : vector<2x256xf32>
    %392 = vector.broadcast %41 : f32 to vector<2x1xf32>
    %393 = vector.broadcast %90 : f32 to vector<2x1xf32>
    %394 = arith.select %136, %392, %393 : vector<2x1xi1>, vector<2x1xf32>
    %395 = vector.extract_strided_slice %34 {offsets = [0, 5], sizes = [2, 256], strides = [1, 1]} : vector<2x358xf32> to vector<2x256xf32>
    %396 = vector.broadcast %394 : vector<2x1xf32> to vector<2x256xf32>
    %397 = arith.mulf %396, %395 : vector<2x256xf32>
    %398 = vector.broadcast %48 : f32 to vector<2x1xf32>
    %399 = vector.broadcast %97 : f32 to vector<2x1xf32>
    %400 = arith.select %136, %398, %399 : vector<2x1xi1>, vector<2x1xf32>
    %401 = vector.extract_strided_slice %34 {offsets = [0, 21], sizes = [2, 256], strides = [1, 1]} : vector<2x358xf32> to vector<2x256xf32>
    %402 = vector.broadcast %400 : vector<2x1xf32> to vector<2x256xf32>
    %403 = arith.mulf %402, %401 : vector<2x256xf32>
    %404 = arith.addf %397, %403 : vector<2x256xf32>
    %405 = vector.broadcast %55 : f32 to vector<2x1xf32>
    %406 = vector.broadcast %104 : f32 to vector<2x1xf32>
    %407 = arith.select %136, %405, %406 : vector<2x1xi1>, vector<2x1xf32>
    %408 = vector.extract_strided_slice %34 {offsets = [0, 37], sizes = [2, 256], strides = [1, 1]} : vector<2x358xf32> to vector<2x256xf32>
    %409 = vector.broadcast %407 : vector<2x1xf32> to vector<2x256xf32>
    %410 = arith.mulf %409, %408 : vector<2x256xf32>
    %411 = arith.addf %404, %410 : vector<2x256xf32>
    %412 = vector.broadcast %62 : f32 to vector<2x1xf32>
    %413 = vector.broadcast %111 : f32 to vector<2x1xf32>
    %414 = arith.select %136, %412, %413 : vector<2x1xi1>, vector<2x1xf32>
    %415 = vector.extract_strided_slice %34 {offsets = [0, 53], sizes = [2, 256], strides = [1, 1]} : vector<2x358xf32> to vector<2x256xf32>
    %416 = vector.broadcast %414 : vector<2x1xf32> to vector<2x256xf32>
    %417 = arith.mulf %416, %415 : vector<2x256xf32>
    %418 = arith.addf %411, %417 : vector<2x256xf32>
    %419 = vector.broadcast %69 : f32 to vector<2x1xf32>
    %420 = vector.broadcast %118 : f32 to vector<2x1xf32>
    %421 = arith.select %136, %419, %420 : vector<2x1xi1>, vector<2x1xf32>
    %422 = vector.extract_strided_slice %34 {offsets = [0, 69], sizes = [2, 256], strides = [1, 1]} : vector<2x358xf32> to vector<2x256xf32>
    %423 = vector.broadcast %421 : vector<2x1xf32> to vector<2x256xf32>
    %424 = arith.mulf %423, %422 : vector<2x256xf32>
    %425 = arith.addf %418, %424 : vector<2x256xf32>
    %426 = vector.broadcast %76 : f32 to vector<2x1xf32>
    %427 = vector.broadcast %125 : f32 to vector<2x1xf32>
    %428 = arith.select %136, %426, %427 : vector<2x1xi1>, vector<2x1xf32>
    %429 = vector.extract_strided_slice %34 {offsets = [0, 85], sizes = [2, 256], strides = [1, 1]} : vector<2x358xf32> to vector<2x256xf32>
    %430 = vector.broadcast %428 : vector<2x1xf32> to vector<2x256xf32>
    %431 = arith.mulf %430, %429 : vector<2x256xf32>
    %432 = arith.addf %425, %431 : vector<2x256xf32>
    %433 = vector.broadcast %83 : f32 to vector<2x1xf32>
    %434 = vector.broadcast %132 : f32 to vector<2x1xf32>
    %435 = arith.select %136, %433, %434 : vector<2x1xi1>, vector<2x1xf32>
    %436 = vector.extract_strided_slice %34 {offsets = [0, 101], sizes = [2, 256], strides = [1, 1]} : vector<2x358xf32> to vector<2x256xf32>
    %437 = vector.broadcast %435 : vector<2x1xf32> to vector<2x256xf32>
    %438 = arith.mulf %437, %436 : vector<2x256xf32>
    %439 = arith.addf %432, %438 : vector<2x256xf32>
    %440 = vector.extract_strided_slice %35 {offsets = [5, 0], sizes = [1, 256], strides = [1, 1]} : vector<7x256xf32> to vector<1x256xf32>
    %441 = vector.broadcast %440 : vector<1x256xf32> to vector<2x256xf32>
    %442 = arith.mulf %441, %439 : vector<2x256xf32>
    %443 = vector.broadcast %42 : f32 to vector<2x1xf32>
    %444 = vector.broadcast %91 : f32 to vector<2x1xf32>
    %445 = arith.select %136, %443, %444 : vector<2x1xi1>, vector<2x1xf32>
    %446 = vector.extract_strided_slice %34 {offsets = [0, 6], sizes = [2, 256], strides = [1, 1]} : vector<2x358xf32> to vector<2x256xf32>
    %447 = vector.broadcast %445 : vector<2x1xf32> to vector<2x256xf32>
    %448 = arith.mulf %447, %446 : vector<2x256xf32>
    %449 = vector.broadcast %49 : f32 to vector<2x1xf32>
    %450 = vector.broadcast %98 : f32 to vector<2x1xf32>
    %451 = arith.select %136, %449, %450 : vector<2x1xi1>, vector<2x1xf32>
    %452 = vector.extract_strided_slice %34 {offsets = [0, 22], sizes = [2, 256], strides = [1, 1]} : vector<2x358xf32> to vector<2x256xf32>
    %453 = vector.broadcast %451 : vector<2x1xf32> to vector<2x256xf32>
    %454 = arith.mulf %453, %452 : vector<2x256xf32>
    %455 = arith.addf %448, %454 : vector<2x256xf32>
    %456 = vector.broadcast %56 : f32 to vector<2x1xf32>
    %457 = vector.broadcast %105 : f32 to vector<2x1xf32>
    %458 = arith.select %136, %456, %457 : vector<2x1xi1>, vector<2x1xf32>
    %459 = vector.extract_strided_slice %34 {offsets = [0, 38], sizes = [2, 256], strides = [1, 1]} : vector<2x358xf32> to vector<2x256xf32>
    %460 = vector.broadcast %458 : vector<2x1xf32> to vector<2x256xf32>
    %461 = arith.mulf %460, %459 : vector<2x256xf32>
    %462 = arith.addf %455, %461 : vector<2x256xf32>
    %463 = vector.broadcast %63 : f32 to vector<2x1xf32>
    %464 = vector.broadcast %112 : f32 to vector<2x1xf32>
    %465 = arith.select %136, %463, %464 : vector<2x1xi1>, vector<2x1xf32>
    %466 = vector.extract_strided_slice %34 {offsets = [0, 54], sizes = [2, 256], strides = [1, 1]} : vector<2x358xf32> to vector<2x256xf32>
    %467 = vector.broadcast %465 : vector<2x1xf32> to vector<2x256xf32>
    %468 = arith.mulf %467, %466 : vector<2x256xf32>
    %469 = arith.addf %462, %468 : vector<2x256xf32>
    %470 = vector.broadcast %70 : f32 to vector<2x1xf32>
    %471 = vector.broadcast %119 : f32 to vector<2x1xf32>
    %472 = arith.select %136, %470, %471 : vector<2x1xi1>, vector<2x1xf32>
    %473 = vector.extract_strided_slice %34 {offsets = [0, 70], sizes = [2, 256], strides = [1, 1]} : vector<2x358xf32> to vector<2x256xf32>
    %474 = vector.broadcast %472 : vector<2x1xf32> to vector<2x256xf32>
    %475 = arith.mulf %474, %473 : vector<2x256xf32>
    %476 = arith.addf %469, %475 : vector<2x256xf32>
    %477 = vector.broadcast %77 : f32 to vector<2x1xf32>
    %478 = vector.broadcast %126 : f32 to vector<2x1xf32>
    %479 = arith.select %136, %477, %478 : vector<2x1xi1>, vector<2x1xf32>
    %480 = vector.extract_strided_slice %34 {offsets = [0, 86], sizes = [2, 256], strides = [1, 1]} : vector<2x358xf32> to vector<2x256xf32>
    %481 = vector.broadcast %479 : vector<2x1xf32> to vector<2x256xf32>
    %482 = arith.mulf %481, %480 : vector<2x256xf32>
    %483 = arith.addf %476, %482 : vector<2x256xf32>
    %484 = vector.broadcast %84 : f32 to vector<2x1xf32>
    %485 = vector.broadcast %133 : f32 to vector<2x1xf32>
    %486 = arith.select %136, %484, %485 : vector<2x1xi1>, vector<2x1xf32>
    %487 = vector.extract_strided_slice %34 {offsets = [0, 102], sizes = [2, 256], strides = [1, 1]} : vector<2x358xf32> to vector<2x256xf32>
    %488 = vector.broadcast %486 : vector<2x1xf32> to vector<2x256xf32>
    %489 = arith.mulf %488, %487 : vector<2x256xf32>
    %490 = arith.addf %483, %489 : vector<2x256xf32>
    %491 = vector.extract_strided_slice %35 {offsets = [6, 0], sizes = [1, 256], strides = [1, 1]} : vector<7x256xf32> to vector<1x256xf32>
    %492 = vector.broadcast %491 : vector<1x256xf32> to vector<2x256xf32>
    %493 = arith.mulf %492, %490 : vector<2x256xf32>
    %494 = arith.addf %187, %238 : vector<2x256xf32>
    %495 = arith.addf %289, %340 : vector<2x256xf32>
    %496 = arith.addf %391, %442 : vector<2x256xf32>
    %497 = arith.addf %494, %495 : vector<2x256xf32>
    %498 = arith.addf %496, %493 : vector<2x256xf32>
    %499 = arith.addf %497, %498 : vector<2x256xf32>
    %500 = vector.extract_strided_slice %499 {offsets = [0, 0], sizes = [1, 256], strides = [1, 1]} : vector<2x256xf32> to vector<1x256xf32>
    %501 = vector.extract_strided_slice %499 {offsets = [1, 0], sizes = [1, 256], strides = [1, 1]} : vector<2x256xf32> to vector<1x256xf32>
    %502 = arith.addf %500, %501 : vector<1x256xf32>
    %503 = arith.negf %502 : vector<1x256xf32>
    %504 = math.exp %503 : vector<1x256xf32>
    %cst_28 = arith.constant 1.000000e+00 : f32
    %505 = vector.broadcast %cst_28 : f32 to vector<1x256xf32>
    %506 = arith.addf %505, %504 : vector<1x256xf32>
    %507 = arith.divf %505, %506 : vector<1x256xf32>
    %508 = vector.shape_cast %507 : vector<1x256xf32> to vector<1x1x256xf32>
    %c0_29 = arith.constant 0 : index
    %c0_30 = arith.constant 0 : index
    %c0_31 = arith.constant 0 : index
    %509 = vector.load %arg5[%c0_29, %c0_30, %c0_31] : memref<1x32x256xf32, #tpu.memory_space<vmem>>, vector<1x32x256xf32>
    %510 = vector.broadcast %21 : vector<1x32x1xf32> to vector<1x32x256xf32>
    %511 = arith.mulf %509, %510 : vector<1x32x256xf32>
    %512 = vector.broadcast %508 : vector<1x1x256xf32> to vector<1x32x256xf32>
    %513 = arith.mulf %511, %512 : vector<1x32x256xf32>
    %c0_32 = arith.constant 0 : index
    %c0_33 = arith.constant 0 : index
    %c0_34 = arith.constant 0 : index
    %514 = vector.load %arg6[%c0_32, %c0_33, %c0_34] : memref<1x32x256xf32, #tpu.memory_space<vmem>>, vector<1x32x256xf32>
    tpu.vector_store %arg6[%c0_32, %c0_33, %c0_34], %513 {strides = array<i32>} : memref<1x32x256xf32, #tpu.memory_space<vmem>>, vector<1x32x256xf32>,
    return
  }
  func.func @transform_0(%arg0: i32) -> (i32, i32) {
    %c0_i32 = arith.constant 0 : i32
    %c0_i32_0 = arith.constant 0 : i32
    %c0_i32_1 = arith.constant 0 : i32
    return %c0_i32, %c0_i32_0 : i32, i32
  }
  func.func @transform_1(%arg0: i32) -> (i32, i32) {
    %c0_i32 = arith.constant 0 : i32
    %c0_i32_0 = arith.constant 0 : i32
    %c0_i32_1 = arith.constant 0 : i32
    return %c0_i32, %c0_i32_0 : i32, i32
  }
  func.func @transform_2(%arg0: i32) -> (i32, i32) {
    %c0_i32 = arith.constant 0 : i32
    %c0_i32_0 = arith.constant 0 : i32
    %c0_i32_1 = arith.constant 0 : i32
    return %c0_i32, %c0_i32_0 : i32, i32
  }
  func.func @transform_3(%arg0: i32) -> i32 {
    %c0_i32 = arith.constant 0 : i32
    %c0_i32_0 = arith.constant 0 : i32
    return %c0_i32 : i32
  }
  func.func @transform_4(%arg0: i32) -> (i32, i32, i32) {
    %c0_i32 = arith.constant 0 : i32
    %c0_i32_0 = arith.constant 0 : i32
    %c0_i32_1 = arith.constant 0 : i32
    return %arg0, %c0_i32, %c0_i32_0 : i32, i32, i32
  }
  func.func @transform_5(%arg0: i32) -> (i32, i32, i32) {
    %c0_i32 = arith.constant 0 : i32
    %c0_i32_0 = arith.constant 0 : i32
    %c0_i32_1 = arith.constant 0 : i32
    return %arg0, %c0_i32, %c0_i32_0 : i32, i32, i32
  }
}

</mosaic_0001>

<llo_original>
// kernel: tpu_custom_call.1
$region0: #{tpu_custom_call.1}
  #allocation0 [shape = 'u32[]', space=smem, size = 0x4, offset = 0x4, fixed_abs, tag = 'smem constant byte address 0x4 - core index']
  #allocation1 [shape = 'u32[72,128]{1,0:T(1,128)}', space=vmem, size = 0x9000, scoped, tag = 'internal scratch']
  %s0 = inlined_call_operand.vmem [shape: f32[32,4], index: 0, kind: input, shape index: {}]
  %s1 = inlined_call_operand.vmem [shape: f32[4,32], index: 1, kind: input, shape index: {}]
  %s2 = inlined_call_operand.vmem [shape: f32[7,256], index: 2, kind: input, shape index: {}]
  %s3 = inlined_call_operand.vmem [shape: f32[98], index: 3, kind: input, shape index: {}]
  %s4 = inlined_call_operand.hbm [shape: f32[2,32,256], index: 4, kind: input, shape index: {}]
  %s5 = inlined_call_operand.hbm [shape: f32[2,32,256], index: 5, kind: output, shape index: {}]
  %s6 = sld [smem:[#allocation0]]
  $region61: #{tpu_custom_call.1} parent=0
    _
  %s8 = ssub.s32 1, %s6
  %s9 = scalar_select 0, %s8, %s6
  $region1: #{tpu_custom_call.1} parent=0
    #allocation2 [shape = 'u8[512]{0}', space=smem, size = 0x200, scoped, tag = 'input window, operand 3, single buffered']
    #allocation3 [shape = 's32[2]{0}', space=sflag, size = 0x8, scoped, tag = 'scoped memory for tpu_custom_call.1']
    #allocation4 [shape = 's32[2]{0}', space=sflag, size = 0x8, scoped, tag = 'scoped memory for tpu_custom_call.1']
    #allocation5 [shape = 's32[2]{0}', space=sflag, size = 0x8, scoped, tag = 'scoped memory for tpu_custom_call.1']
    #allocation6 [shape = 'u8[65536]{0}', space=vmem, size = 0x10000, scoped, tag = 'input window, operand 4']
    #allocation7 [shape = 'u8[65536]{0}', space=vmem, size = 0x10000, scoped, tag = 'output window, operand 0']
    %10 = vsyncpa [#allocation5], 0
    %11 = vsyncpa [#allocation3], 0
    %s12 = scalar_lea.sflag [#allocation3], 1
    %13 = vsyncpa %s12, 0
    %14 = vsyncpa [#allocation4], 0
    %s15 = scalar_lea.sflag [#allocation4], 1
    %16 = vsyncpa %s15, 0
    loop: start=0, step=1, limit=4
    $region2: #{tpu_custom_call.1} parent=1 // loop_pre_header
      _
    $region3: #{tpu_custom_call.1} parent=1 // loop_header
      %s18 = sphi 0, %s22
      %p19 = scmp.ge.s32.totalorder %s18, 4
      %s26 = sphi 0, %s26
      %s28 = sphi 0, %s26
      %s29 = sphi 0, %s28
      %s43 = sphi 0, %s29
      %s47 = sphi 0, %s47
      %s49 = sphi 0, %s47
      %s50 = sphi 0, %s49
      %s64 = sphi 0, %s50
      %s68 = sphi 0, %s68
      %s70 = sphi 0, %s68
      %s71 = sphi 0, %s70
      %s85 = sphi 0, %s71
      %s89 = sphi 0, %s89
      %s91 = sphi 0, %s89
      %s92 = sphi 0, %s91
      %s106 = sphi 0, %s92
      %s112 = sphi 0, %s114
      %s115 = sphi 0, %s112
      %s116 = sphi 0, %s115
      %s132 = sphi 0, %s116
      %s138 = sphi 0, %s140
      %s141 = sphi 0, %s138
      %s142 = sphi 0, %s141
      %s158 = sphi 0, %s142
    $region4: #{tpu_custom_call.1} parent=1 // loop_header_branch
      %21 = sbr.rel (%p19) target = $region8
    $region5: #{tpu_custom_call.1} parent=1 // loop_body
      %s23 = ssub.s32 %s18, 1
      %s24 = ssub.s32 %s18, 2
      %s25 = sadd.s32 %s18, 1
      %s27 = sadd.s32 %s26, 1
      %p30 = scmp.eq.s32.totalorder %s18, 1
      %p31 = scmp.ne.s32.totalorder %s26, %s28
      %p32 = scmp.eq.s32.totalorder %s18, 0
      %p33 = por %p31, %p32
      %p34 = scmp.ne.s32.totalorder %s26, %s28
      %p35 = scmp.eq.s32.totalorder %s23, 1
      %p36 = por %p34, %p35
      %p37 = scmp.ne.s32.totalorder %s28, %s29
      %p38 = scmp.eq.s32.totalorder %s23, 0
      %p39 = por %p37, %p38
      %p40 = scmp.ne.s32.totalorder %s28, %s29
      %p41 = scmp.eq.s32.totalorder %s24, 1
      %p42 = por %p40, %p41
      %p44 = scmp.ne.s32.totalorder %s29, %s43
      %p45 = scmp.eq.s32.totalorder %s24, 0
      %p46 = por %p44, %p45
      %s48 = sadd.s32 %s47, 1
      %p51 = scmp.eq.s32.totalorder %s18, 1
      %p52 = scmp.ne.s32.totalorder %s47, %s49
      %p53 = scmp.eq.s32.totalorder %s18, 0
      %p54 = por %p52, %p53
      %p55 = scmp.ne.s32.totalorder %s47, %s49
      %p56 = scmp.eq.s32.totalorder %s23, 1
      %p57 = por %p55, %p56
      %p58 = scmp.ne.s32.totalorder %s49, %s50
      %p59 = scmp.eq.s32.totalorder %s23, 0
      %p60 = por %p58, %p59
      %p61 = scmp.ne.s32.totalorder %s49, %s50
      %p62 = scmp.eq.s32.totalorder %s24, 1
      %p63 = por %p61, %p62
      %p65 = scmp.ne.s32.totalorder %s50, %s64
      %p66 = scmp.eq.s32.totalorder %s24, 0
      %p67 = por %p65, %p66
      %s69 = sadd.s32 %s68, 1
      %p72 = scmp.eq.s32.totalorder %s18, 1
      %p73 = scmp.ne.s32.totalorder %s68, %s70
      %p74 = scmp.eq.s32.totalorder %s18, 0
      %p75 = por %p73, %p74
      %p76 = scmp.ne.s32.totalorder %s68, %s70
      %p77 = scmp.eq.s32.totalorder %s23, 1
      %p78 = por %p76, %p77
      %p79 = scmp.ne.s32.totalorder %s70, %s71
      %p80 = scmp.eq.s32.totalorder %s23, 0
      %p81 = por %p79, %p80
      %p82 = scmp.ne.s32.totalorder %s70, %s71
      %p83 = scmp.eq.s32.totalorder %s24, 1
      %p84 = por %p82, %p83
      %p86 = scmp.ne.s32.totalorder %s71, %s85
      %p87 = scmp.eq.s32.totalorder %s24, 0
      %p88 = por %p86, %p87
      %s90 = sadd.s32 %s89, 1
      %p93 = scmp.eq.s32.totalorder %s18, 1
      %p94 = scmp.ne.s32.totalorder %s89, %s91
      %p95 = scmp.eq.s32.totalorder %s18, 0
      %p96 = por %p94, %p95
      %p97 = scmp.ne.s32.totalorder %s89, %s91
      %p98 = scmp.eq.s32.totalorder %s23, 1
      %p99 = por %p97, %p98
      %p100 = scmp.ne.s32.totalorder %s91, %s92
      %p101 = scmp.eq.s32.totalorder %s23, 0
      %p102 = por %p100, %p101
      %p103 = scmp.ne.s32.totalorder %s91, %s92
      %p104 = scmp.eq.s32.totalorder %s24, 1
      %p105 = por %p103, %p104
      %p107 = scmp.ne.s32.totalorder %s92, %s106
      %p108 = scmp.eq.s32.totalorder %s24, 0
      %p109 = por %p107, %p108
      %s110 = ssub.s32 %s18, %s25
      %p111 = scmp.eq.s32.totalorder %s110, 0
      %s113 = sadd.s32 %s112, 1
      %s114 = scalar_select %p111, %s112, %s113
      %p117 = pneg %p111
      %p118 = scmp.eq.s32.totalorder %s18, 1
      %p119 = por %p117, %p118
      %p120 = scmp.ne.s32.totalorder %s112, %s115
      %p121 = scmp.eq.s32.totalorder %s18, 0
      %p122 = por %p120, %p121
      %p123 = scmp.ne.s32.totalorder %s112, %s115
      %p124 = scmp.eq.s32.totalorder %s23, 1
      %p125 = por %p123, %p124
      %p126 = scmp.ne.s32.totalorder %s115, %s116
      %p127 = scmp.eq.s32.totalorder %s23, 0
      %p128 = por %p126, %p127
      %p129 = scmp.ne.s32.totalorder %s115, %s116
      %p130 = scmp.eq.s32.totalorder %s24, 1
      %p131 = por %p129, %p130
      %p133 = scmp.ne.s32.totalorder %s116, %s132
      %p134 = scmp.eq.s32.totalorder %s24, 0
      %p135 = por %p133, %p134
      %s136 = ssub.s32 %s18, %s25
      %p137 = scmp.eq.s32.totalorder %s136, 0
      %s139 = sadd.s32 %s138, 1
      %s140 = scalar_select %p137, %s138, %s139
      %p143 = pneg %p137
      %p144 = scmp.eq.s32.totalorder %s18, 1
      %p145 = por %p143, %p144
      %p146 = scmp.ne.s32.totalorder %s138, %s141
      %p147 = scmp.eq.s32.totalorder %s18, 0
      %p148 = por %p146, %p147
      %p149 = scmp.ne.s32.totalorder %s138, %s141
      %p150 = scmp.eq.s32.totalorder %s23, 1
      %p151 = por %p149, %p150
      %p152 = scmp.ne.s32.totalorder %s141, %s142
      %p153 = scmp.eq.s32.totalorder %s23, 0
      %p154 = por %p152, %p153
      %p155 = scmp.ne.s32.totalorder %s141, %s142
      %p156 = scmp.eq.s32.totalorder %s24, 1
      %p157 = por %p155, %p156
      %p159 = scmp.ne.s32.totalorder %s142, %s158
      %p160 = scmp.eq.s32.totalorder %s24, 0
      %p161 = por %p159, %p160
      %p162 = scmp.le.s32.totalorder 1, %s18
      %p163 = scmp.lt.s32.totalorder %s18, 3
      %p164 = pnand %p162, %p163
      %p165 = pneg %p164
      // Predicated region
      $region9: #{tpu_custom_call.1} parent=5 // pred_check
        _
      $region10: #{tpu_custom_call.1} parent=5 // pred_check_branch
        %167 = sbr.rel (%p164) target = $region12
      $region11: #{tpu_custom_call.1} parent=5 // pred_region
        %s168 = ssub.s32 %s18, 1
        // Predicated region
        $region13: #{tpu_custom_call.1} parent=11 // pred_check
          %p169 = pneg %p39
        $region14: #{tpu_custom_call.1} parent=11 // pred_check_branch
          %171 = sbr.rel (%p169) target = $region16
        $region15: #{tpu_custom_call.1} parent=11 // pred_region
          _
        $region16: #{tpu_custom_call.1} parent=11 // pred_fallthru
          _
        // Predicated region
        $region17: #{tpu_custom_call.1} parent=11 // pred_check
          %p172 = pneg %p60
        $region18: #{tpu_custom_call.1} parent=11 // pred_check_branch
          %174 = sbr.rel (%p172) target = $region20
        $region19: #{tpu_custom_call.1} parent=11 // pred_region
          _
        $region20: #{tpu_custom_call.1} parent=11 // pred_fallthru
          _
        // Predicated region
        $region21: #{tpu_custom_call.1} parent=11 // pred_check
          %p175 = pneg %p81
        $region22: #{tpu_custom_call.1} parent=11 // pred_check_branch
          %177 = sbr.rel (%p175) target = $region24
        $region23: #{tpu_custom_call.1} parent=11 // pred_region
          _
        $region24: #{tpu_custom_call.1} parent=11 // pred_fallthru
          _
        // Predicated region
        $region25: #{tpu_custom_call.1} parent=11 // pred_check
          %p178 = pneg %p102
        $region26: #{tpu_custom_call.1} parent=11 // pred_check_branch
          %180 = sbr.rel (%p178) target = $region28
        $region27: #{tpu_custom_call.1} parent=11 // pred_region
          %182 = vsyncadd [#allocation5], 0
          %s184 = sshll.u32 %s3, 4
          %s185 = int_to_ptr.vmem [resolvable:$true] %s184
          %187 = dma.vmem_to_smem %s185, 16, [#allocation2], [#allocation5]
        $region28: #{tpu_custom_call.1} parent=11 // pred_fallthru
          _
      $region12: #{tpu_custom_call.1} parent=5 // pred_fallthru
        _
      %p188 = scmp.lt.s32.totalorder %s18, 2
      // Predicated region
      $region29: #{tpu_custom_call.1} parent=5 // pred_check
        %p189 = pneg %p188
      $region30: #{tpu_custom_call.1} parent=5 // pred_check_branch
        %191 = sbr.rel (%p189) target = $region32
      $region31: #{tpu_custom_call.1} parent=5 // pred_region
        // Predicated region
        $region33: #{tpu_custom_call.1} parent=31 // pred_check
          %p192 = pneg %p122
        $region34: #{tpu_custom_call.1} parent=31 // pred_check_branch
          %194 = sbr.rel (%p192) target = $region36
        $region35: #{tpu_custom_call.1} parent=31 // pred_region
          %s195 = sand.u32 %s112, 1
          %s196 = scalar_lea.sflag [#allocation3], %s195
          %s197 = sand.u32 %s112, 1
          %s198 = smul.addr %s197, 64
          %s199 = scalar_lea.vmem [#allocation6], %s198
          %201 = vsyncadd %s196, 0
          %s202 = smul.addr %s18, 8
          %s203 = smul.addr %s202, 8
          %s204 = scalar_lea.hbm %s4, %s203
          %s205 = sshll.u32 %s204, 4
          %s206 = int_to_ptr.hbm [resolvable:$true] %s205
          %s207 = sshll.u32 %s199, 4
          %s208 = int_to_ptr.vmem [resolvable:$true] %s207
          %213 = dma.hbm_to_vmem [thread:$0]  %s206, 1024, %s208, %s196, 256, 256, 16
        $region36: #{tpu_custom_call.1} parent=31 // pred_fallthru
          _
      $region32: #{tpu_custom_call.1} parent=5 // pred_fallthru
        _
      %p214 = scmp.le.s32.totalorder 1, %s18
      %p215 = scmp.lt.s32.totalorder %s18, 3
      %p216 = pnand %p214, %p215
      %p217 = pneg %p216
      // Predicated region
      $region37: #{tpu_custom_call.1} parent=5 // pred_check
        _
      $region38: #{tpu_custom_call.1} parent=5 // pred_check_branch
        %219 = sbr.rel (%p216) target = $region40
      $region39: #{tpu_custom_call.1} parent=5 // pred_region
        %s220 = ssub.s32 %s18, 1
        // Predicated region
        $region41: #{tpu_custom_call.1} parent=39 // pred_check
          %p221 = pneg %p102
        $region42: #{tpu_custom_call.1} parent=39 // pred_check_branch
          %223 = sbr.rel (%p221) target = $region44
        $region43: #{tpu_custom_call.1} parent=39 // pred_region
          %225 = dma.done [#allocation5], 16
        $region44: #{tpu_custom_call.1} parent=39 // pred_fallthru
          _
        %s226 = sand.u32 %s115, 1
        %s227 = scalar_lea.sflag [#allocation3], %s226
        %s228 = sand.u32 %s115, 1
        %s229 = smul.addr %s228, 64
        %s230 = scalar_lea.vmem [#allocation6], %s229
        // Predicated region
        $region45: #{tpu_custom_call.1} parent=39 // pred_check
          %p231 = pneg %p128
        $region46: #{tpu_custom_call.1} parent=39 // pred_check_branch
          %233 = sbr.rel (%p231) target = $region48
        $region47: #{tpu_custom_call.1} parent=39 // pred_region
          %235 = dma.done %s227, 1024
        $region48: #{tpu_custom_call.1} parent=39 // pred_fallthru
          _
        %236 = sfence
        %p237 = pneg %p39
        %p238 = pneg %p36
        %p239 = pneg %p60
        %p240 = pneg %p57
        %p241 = pneg %p81
        %p242 = pneg %p78
        %p243 = pneg %p102
        %p244 = pneg %p99
        %s245 = sand.u32 %s115, 1
        %s246 = scalar_lea.sflag [#allocation3], %s245
        %s247 = sand.u32 %s115, 1
        %s248 = smul.addr %s247, 64
        %s249 = scalar_lea.vmem [#allocation6], %s248
        %p250 = pneg %p128
        %p251 = pneg %p125
        %p252 = pneg %p154
        %p253 = pneg %p151
        %s254 = sand.u32 %s141, 1
        %s255 = scalar_lea.sflag [#allocation4], %s254
        %s256 = sand.u32 %s141, 1
        %s257 = smul.addr %s256, 64
        %s258 = scalar_lea.vmem [#allocation7], %s257
        %v259 = vld [vmem:[%s230] sm:$0xff]
        %v260 = vld [vmem:[%s230 + $0x8] sm:$0xff]
        %v261 = vld [vmem:[%s230 + $0x10] sm:$0xff]
        %v262 = vld [vmem:[%s230 + $0x18] sm:$0xff]
        %v263 = vld [vmem:[%s230 + $0x20] sm:$0xff]
        %v264 = vld [vmem:[%s230 + $0x28] sm:$0xff]
        %v265 = vld [vmem:[%s230 + $0x30] sm:$0xff]
        %v266 = vld [vmem:[%s230 + $0x38] sm:$0xff]
        %v267 = vadd.f32 %v259, %v260
        %268 = vadd.xlane.f32.xlu0 %v267
        %v269 = vpop.xlane.xlu0 %268
        %v270 = vadd.f32 %v261, %v262
        %271 = vadd.xlane.f32.xlu0 %v270
        %v272 = vpop.xlane.xlu0 %271
        %v273 = vadd.f32 %v263, %v264
        %274 = vadd.xlane.f32.xlu0 %v273
        %v275 = vpop.xlane.xlu0 %274
        %v276 = vadd.f32 %v265, %v266
        %277 = vadd.xlane.f32.xlu0 %v276
        %v278 = vpop.xlane.xlu0 %277
        %v279 = vmul.f32 %v269, 0.00390625
        %v280 = vmul.f32 %v272, 0.00390625
        %v281 = vmul.f32 %v275, 0.00390625
        %v282 = vmul.f32 %v278, 0.00390625
        %v283 = vmax.f32 %v259, %v260
        %284 = vmax.xlane.f32.xlu0 %v283
        %v285 = vpop.xlane.xlu0 %284
        %v286 = vmax.f32 %v261, %v262
        %287 = vmax.xlane.f32.xlu0 %v286
        %v288 = vpop.xlane.xlu0 %287
        %v289 = vmax.f32 %v263, %v264
        %290 = vmax.xlane.f32.xlu0 %v289
        %v291 = vpop.xlane.xlu0 %290
        %v292 = vmax.f32 %v265, %v266
        %293 = vmax.xlane.f32.xlu0 %v292
        %v294 = vpop.xlane.xlu0 %293
        %v299 = vlaneseq
        %v300 = vand.u32 %v299, 127
        %v301 = vperm.slane %v279, %v300
        %v302 = vadd.s32 %v300, 4294967288
        %v303 = vperm.slane %v280, %v302
        %vm304 = vcmask 130112
        %v305 = vsel %vm304, %v303, %v301
        %v306 = vadd.s32 %v300, 4294967280
        %v307 = vperm.slane %v281, %v306
        %vm308 = vcmask 195712
        %v309 = vsel %vm308, %v307, %v305
        %v310 = vadd.s32 %v300, 4294967272
        %v311 = vperm.slane %v282, %v310
        %vm312 = vcmask 261312
        %v313 = vsel %vm312, %v311, %v309
        %v319 = vperm.slane %v285, %v300
        %v320 = vperm.slane %v288, %v302
        %v321 = vsel %vm304, %v320, %v319
        %v322 = vperm.slane %v291, %v306
        %v323 = vsel %vm308, %v322, %v321
        %v324 = vperm.slane %v294, %v310
        %v325 = vsel %vm312, %v324, %v323
        %vm327 = vcmask 1040384
        %v328 = vsel %vm327, %v313, %v325
        %v329 = vld [vmem:[%s0] sm:$0xff]
        %v330 = vld [vmem:[%s0 + $0x8] sm:$0xff]
        %v331 = vld [vmem:[%s0 + $0x10] sm:$0xff]
        %v332 = vld [vmem:[%s0 + $0x18] sm:$0xff]
        %vm333 = vcmask 261120
        %v335 = vsel %vm333, %v328, 0
        %337 = vmatpush.msra.mxu0 0.0
        %338 = vmatpush.msra.mxu0 0.0
        %339 = vmatpush.msra.mxu0 0.0
        %340 = vmatpush.msra.mxu0 0.0
        %341 = vmatpush.msra.mxu0 0.0
        %342 = vmatpush.msra.mxu0 0.0
        %343 = vmatpush.msra.mxu0 0.0
        %344 = vmatpush.msra.mxu0 0.0
        %345 = vmatpush.msra.mxu0 0.0
        %346 = vmatpush.msra.mxu0 0.0
        %347 = vmatpush.msra.mxu0 0.0
        %348 = vmatpush.msra.mxu0 0.0
        %v349 = vand.u32 %v332, 4294901760
        %350 = vmatpush.msra.mxu0 %v349
        %v351 = vand.u32 %v331, 4294901760
        %352 = vmatpush.msra.mxu0 %v351
        %v353 = vand.u32 %v330, 4294901760
        %354 = vmatpush.msra.mxu0 %v353
        %v355 = vand.u32 %v329, 4294901760
        %356 = vmatpush.msra.mxu0 %v355
        %v357 = vand.u32 %v335, 4294901760
        %v358 = vsub.f32 %v335, %v357
        %v359 = vand.u32 %v358, 4294901760
        %v360 = vsub.f32 %v358, %v359
        %v361 = vand.u32 %v360, 4294901760
        %362 = vmatmul.f32.gmra.mxu0 %v361
        %v363 = vpop.f32.mrf.mxu0
        %v364 = vadd.f32 0.0, %v363
        %365 = vdwg.mxu0
        %366 = vmatpush.msra.mxu0 0.0
        %367 = vmatpush.msra.mxu0 0.0
        %368 = vmatpush.msra.mxu0 0.0
        %369 = vmatpush.msra.mxu0 0.0
        %370 = vmatpush.msra.mxu0 0.0
        %371 = vmatpush.msra.mxu0 0.0
        %372 = vmatpush.msra.mxu0 0.0
        %373 = vmatpush.msra.mxu0 0.0
        %374 = vmatpush.msra.mxu0 0.0
        %375 = vmatpush.msra.mxu0 0.0
        %376 = vmatpush.msra.mxu0 0.0
        %377 = vmatpush.msra.mxu0 0.0
        %v378 = vand.u32 %v332, 4294901760
        %v379 = vsub.f32 %v332, %v378
        %v380 = vand.u32 %v379, 4294901760
        %v381 = vsub.f32 %v379, %v380
        %v382 = vand.u32 %v381, 4294901760
        %383 = vmatpush.msra.mxu0 %v382
        %v384 = vand.u32 %v331, 4294901760
        %v385 = vsub.f32 %v331, %v384
        %v386 = vand.u32 %v385, 4294901760
        %v387 = vsub.f32 %v385, %v386
        %v388 = vand.u32 %v387, 4294901760
        %389 = vmatpush.msra.mxu0 %v388
        %v390 = vand.u32 %v330, 4294901760
        %v391 = vsub.f32 %v330, %v390
        %v392 = vand.u32 %v391, 4294901760
        %v393 = vsub.f32 %v391, %v392
        %v394 = vand.u32 %v393, 4294901760
        %395 = vmatpush.msra.mxu0 %v394
        %v396 = vand.u32 %v329, 4294901760
        %v397 = vsub.f32 %v329, %v396
        %v398 = vand.u32 %v397, 4294901760
        %v399 = vsub.f32 %v397, %v398
        %v400 = vand.u32 %v399, 4294901760
        %401 = vmatpush.msra.mxu0 %v400
        %v402 = vand.u32 %v335, 4294901760
        %403 = vmatmul.f32.gmra.mxu0 %v402
        %v404 = vpop.f32.mrf.mxu0
        %v405 = vadd.f32 %v364, %v404
        %406 = vdwg.mxu0
        %407 = vmatpush.msra.mxu0 0.0
        %408 = vmatpush.msra.mxu0 0.0
        %409 = vmatpush.msra.mxu0 0.0
        %410 = vmatpush.msra.mxu0 0.0
        %411 = vmatpush.msra.mxu0 0.0
        %412 = vmatpush.msra.mxu0 0.0
        %413 = vmatpush.msra.mxu0 0.0
        %414 = vmatpush.msra.mxu0 0.0
        %415 = vmatpush.msra.mxu0 0.0
        %416 = vmatpush.msra.mxu0 0.0
        %417 = vmatpush.msra.mxu0 0.0
        %418 = vmatpush.msra.mxu0 0.0
        %v419 = vand.u32 %v332, 4294901760
        %v420 = vsub.f32 %v332, %v419
        %421 = vmatpush.msra.mxu0 %v420
        %v422 = vand.u32 %v331, 4294901760
        %v423 = vsub.f32 %v331, %v422
        %424 = vmatpush.msra.mxu0 %v423
        %v425 = vand.u32 %v330, 4294901760
        %v426 = vsub.f32 %v330, %v425
        %427 = vmatpush.msra.mxu0 %v426
        %v428 = vand.u32 %v329, 4294901760
        %v429 = vsub.f32 %v329, %v428
        %430 = vmatpush.msra.mxu0 %v429
        %v431 = vand.u32 %v335, 4294901760
        %v432 = vsub.f32 %v335, %v431
        %433 = vmatmul.f32.gmra.mxu0 %v432
        %v434 = vpop.f32.mrf.mxu0
        %v435 = vadd.f32 %v405, %v434
        %436 = vdwg.mxu0
        %437 = vmatpush.msra.mxu0 0.0
        %438 = vmatpush.msra.mxu0 0.0
        %439 = vmatpush.msra.mxu0 0.0
        %440 = vmatpush.msra.mxu0 0.0
        %441 = vmatpush.msra.mxu0 0.0
        %442 = vmatpush.msra.mxu0 0.0
        %443 = vmatpush.msra.mxu0 0.0
        %444 = vmatpush.msra.mxu0 0.0
        %445 = vmatpush.msra.mxu0 0.0
        %446 = vmatpush.msra.mxu0 0.0
        %447 = vmatpush.msra.mxu0 0.0
        %448 = vmatpush.msra.mxu0 0.0
        %v449 = vand.u32 %v332, 4294901760
        %450 = vmatpush.msra.mxu0 %v449
        %v451 = vand.u32 %v331, 4294901760
        %452 = vmatpush.msra.mxu0 %v451
        %v453 = vand.u32 %v330, 4294901760
        %454 = vmatpush.msra.mxu0 %v453
        %v455 = vand.u32 %v329, 4294901760
        %456 = vmatpush.msra.mxu0 %v455
        %v457 = vand.u32 %v335, 4294901760
        %v458 = vsub.f32 %v335, %v457
        %v459 = vand.u32 %v458, 4294901760
        %460 = vmatmul.f32.gmra.mxu0 %v459
        %v461 = vpop.f32.mrf.mxu0
        %v462 = vadd.f32 %v435, %v461
        %463 = vdwg.mxu0
        %464 = vmatpush.msra.mxu0 0.0
        %465 = vmatpush.msra.mxu0 0.0
        %466 = vmatpush.msra.mxu0 0.0
        %467 = vmatpush.msra.mxu0 0.0
        %468 = vmatpush.msra.mxu0 0.0
        %469 = vmatpush.msra.mxu0 0.0
        %470 = vmatpush.msra.mxu0 0.0
        %471 = vmatpush.msra.mxu0 0.0
        %472 = vmatpush.msra.mxu0 0.0
        %473 = vmatpush.msra.mxu0 0.0
        %474 = vmatpush.msra.mxu0 0.0
        %475 = vmatpush.msra.mxu0 0.0
        %v476 = vand.u32 %v332, 4294901760
        %v477 = vsub.f32 %v332, %v476
        %v478 = vand.u32 %v477, 4294901760
        %479 = vmatpush.msra.mxu0 %v478
        %v480 = vand.u32 %v331, 4294901760
        %v481 = vsub.f32 %v331, %v480
        %v482 = vand.u32 %v481, 4294901760
        %483 = vmatpush.msra.mxu0 %v482
        %v484 = vand.u32 %v330, 4294901760
        %v485 = vsub.f32 %v330, %v484
        %v486 = vand.u32 %v485, 4294901760
        %487 = vmatpush.msra.mxu0 %v486
        %v488 = vand.u32 %v329, 4294901760
        %v489 = vsub.f32 %v329, %v488
        %v490 = vand.u32 %v489, 4294901760
        %491 = vmatpush.msra.mxu0 %v490
        %v492 = vand.u32 %v335, 4294901760
        %493 = vmatmul.f32.gmra.mxu0 %v492
        %v494 = vpop.f32.mrf.mxu0
        %v495 = vadd.f32 %v462, %v494
        %496 = vdwg.mxu0
        %497 = vmatpush.msra.mxu0 0.0
        %498 = vmatpush.msra.mxu0 0.0
        %499 = vmatpush.msra.mxu0 0.0
        %500 = vmatpush.msra.mxu0 0.0
        %501 = vmatpush.msra.mxu0 0.0
        %502 = vmatpush.msra.mxu0 0.0
        %503 = vmatpush.msra.mxu0 0.0
        %504 = vmatpush.msra.mxu0 0.0
        %505 = vmatpush.msra.mxu0 0.0
        %506 = vmatpush.msra.mxu0 0.0
        %507 = vmatpush.msra.mxu0 0.0
        %508 = vmatpush.msra.mxu0 0.0
        %v509 = vand.u32 %v332, 4294901760
        %510 = vmatpush.msra.mxu0 %v509
        %v511 = vand.u32 %v331, 4294901760
        %512 = vmatpush.msra.mxu0 %v511
        %v513 = vand.u32 %v330, 4294901760
        %514 = vmatpush.msra.mxu0 %v513
        %v515 = vand.u32 %v329, 4294901760
        %516 = vmatpush.msra.mxu0 %v515
        %v517 = vand.u32 %v335, 4294901760
        %518 = vmatmul.f32.gmra.mxu0 %v517
        %v519 = vpop.f32.mrf.mxu0
        %v520 = vadd.f32 %v495, %v519
        %521 = vdwg.mxu0
        %v522 = vmax.f32 %v520, 0.0
        %v523 = vld [vmem:[%s1] sm:$0xf]
        %vm524 = vcmask 31744
        %v526 = vsel %vm524, %v522, 0
        %vm528 = vcmask 1043456
        %v530 = vsel %vm528, %v523, 0
        %532 = vmatpush.msra.mxu0 0.0
        %533 = vmatpush.msra.mxu0 0.0
        %534 = vmatpush.msra.mxu0 0.0
        %535 = vmatpush.msra.mxu0 0.0
        %536 = vmatpush.msra.mxu0 0.0
        %537 = vmatpush.msra.mxu0 0.0
        %538 = vmatpush.msra.mxu0 0.0
        %539 = vmatpush.msra.mxu0 0.0
        %540 = vmatpush.msra.mxu0 0.0
        %541 = vmatpush.msra.mxu0 0.0
        %542 = vmatpush.msra.mxu0 0.0
        %543 = vmatpush.msra.mxu0 0.0
        %544 = vmatpush.msra.mxu0 0.0
        %545 = vmatpush.msra.mxu0 0.0
        %546 = vmatpush.msra.mxu0 0.0
        %v547 = vand.u32 %v530, 4294901760
        %548 = vmatpush.msra.mxu0 %v547
        %v549 = vand.u32 %v526, 4294901760
        %v550 = vsub.f32 %v526, %v549
        %v551 = vand.u32 %v550, 4294901760
        %v552 = vsub.f32 %v550, %v551
        %v553 = vand.u32 %v552, 4294901760
        %554 = vmatmul.f32.gmra.mxu0 %v553
        %v555 = vpop.f32.mrf.mxu0
        %v556 = vadd.f32 0.0, %v555
        %557 = vdwg.mxu0
        %558 = vmatpush.msra.mxu0 0.0
        %559 = vmatpush.msra.mxu0 0.0
        %560 = vmatpush.msra.mxu0 0.0
        %561 = vmatpush.msra.mxu0 0.0
        %562 = vmatpush.msra.mxu0 0.0
        %563 = vmatpush.msra.mxu0 0.0
        %564 = vmatpush.msra.mxu0 0.0
        %565 = vmatpush.msra.mxu0 0.0
        %566 = vmatpush.msra.mxu0 0.0
        %567 = vmatpush.msra.mxu0 0.0
        %568 = vmatpush.msra.mxu0 0.0
        %569 = vmatpush.msra.mxu0 0.0
        %570 = vmatpush.msra.mxu0 0.0
        %571 = vmatpush.msra.mxu0 0.0
        %572 = vmatpush.msra.mxu0 0.0
        %v573 = vand.u32 %v530, 4294901760
        %v574 = vsub.f32 %v530, %v573
        %v575 = vand.u32 %v574, 4294901760
        %v576 = vsub.f32 %v574, %v575
        %v577 = vand.u32 %v576, 4294901760
        %578 = vmatpush.msra.mxu0 %v577
        %v579 = vand.u32 %v526, 4294901760
        %580 = vmatmul.f32.gmra.mxu0 %v579
        %v581 = vpop.f32.mrf.mxu0
        %v582 = vadd.f32 %v556, %v581
        %583 = vdwg.mxu0
        %584 = vmatpush.msra.mxu0 0.0
        %585 = vmatpush.msra.mxu0 0.0
        %586 = vmatpush.msra.mxu0 0.0
        %587 = vmatpush.msra.mxu0 0.0
        %588 = vmatpush.msra.mxu0 0.0
        %589 = vmatpush.msra.mxu0 0.0
        %590 = vmatpush.msra.mxu0 0.0
        %591 = vmatpush.msra.mxu0 0.0
        %592 = vmatpush.msra.mxu0 0.0
        %593 = vmatpush.msra.mxu0 0.0
        %594 = vmatpush.msra.mxu0 0.0
        %595 = vmatpush.msra.mxu0 0.0
        %596 = vmatpush.msra.mxu0 0.0
        %597 = vmatpush.msra.mxu0 0.0
        %598 = vmatpush.msra.mxu0 0.0
        %v599 = vand.u32 %v530, 4294901760
        %v600 = vsub.f32 %v530, %v599
        %601 = vmatpush.msra.mxu0 %v600
        %v602 = vand.u32 %v526, 4294901760
        %v603 = vsub.f32 %v526, %v602
        %604 = vmatmul.f32.gmra.mxu0 %v603
        %v605 = vpop.f32.mrf.mxu0
        %v606 = vadd.f32 %v582, %v605
        %607 = vdwg.mxu0
        %608 = vmatpush.msra.mxu0 0.0
        %609 = vmatpush.msra.mxu0 0.0
        %610 = vmatpush.msra.mxu0 0.0
        %611 = vmatpush.msra.mxu0 0.0
        %612 = vmatpush.msra.mxu0 0.0
        %613 = vmatpush.msra.mxu0 0.0
        %614 = vmatpush.msra.mxu0 0.0
        %615 = vmatpush.msra.mxu0 0.0
        %616 = vmatpush.msra.mxu0 0.0
        %617 = vmatpush.msra.mxu0 0.0
        %618 = vmatpush.msra.mxu0 0.0
        %619 = vmatpush.msra.mxu0 0.0
        %620 = vmatpush.msra.mxu0 0.0
        %621 = vmatpush.msra.mxu0 0.0
        %622 = vmatpush.msra.mxu0 0.0
        %v623 = vand.u32 %v530, 4294901760
        %624 = vmatpush.msra.mxu0 %v623
        %v625 = vand.u32 %v526, 4294901760
        %v626 = vsub.f32 %v526, %v625
        %v627 = vand.u32 %v626, 4294901760
        %628 = vmatmul.f32.gmra.mxu0 %v627
        %v629 = vpop.f32.mrf.mxu0
        %v630 = vadd.f32 %v606, %v629
        %631 = vdwg.mxu0
        %632 = vmatpush.msra.mxu0 0.0
        %633 = vmatpush.msra.mxu0 0.0
        %634 = vmatpush.msra.mxu0 0.0
        %635 = vmatpush.msra.mxu0 0.0
        %636 = vmatpush.msra.mxu0 0.0
        %637 = vmatpush.msra.mxu0 0.0
        %638 = vmatpush.msra.mxu0 0.0
        %639 = vmatpush.msra.mxu0 0.0
        %640 = vmatpush.msra.mxu0 0.0
        %641 = vmatpush.msra.mxu0 0.0
        %642 = vmatpush.msra.mxu0 0.0
        %643 = vmatpush.msra.mxu0 0.0
        %644 = vmatpush.msra.mxu0 0.0
        %645 = vmatpush.msra.mxu0 0.0
        %646 = vmatpush.msra.mxu0 0.0
        %v647 = vand.u32 %v530, 4294901760
        %v648 = vsub.f32 %v530, %v647
        %v649 = vand.u32 %v648, 4294901760
        %650 = vmatpush.msra.mxu0 %v649
        %v651 = vand.u32 %v526, 4294901760
        %652 = vmatmul.f32.gmra.mxu0 %v651
        %v653 = vpop.f32.mrf.mxu0
        %v654 = vadd.f32 %v630, %v653
        %655 = vdwg.mxu0
        %656 = vmatpush.msra.mxu0 0.0
        %657 = vmatpush.msra.mxu0 0.0
        %658 = vmatpush.msra.mxu0 0.0
        %659 = vmatpush.msra.mxu0 0.0
        %660 = vmatpush.msra.mxu0 0.0
        %661 = vmatpush.msra.mxu0 0.0
        %662 = vmatpush.msra.mxu0 0.0
        %663 = vmatpush.msra.mxu0 0.0
        %664 = vmatpush.msra.mxu0 0.0
        %665 = vmatpush.msra.mxu0 0.0
        %666 = vmatpush.msra.mxu0 0.0
        %667 = vmatpush.msra.mxu0 0.0
        %668 = vmatpush.msra.mxu0 0.0
        %669 = vmatpush.msra.mxu0 0.0
        %670 = vmatpush.msra.mxu0 0.0
        %v671 = vand.u32 %v530, 4294901760
        %672 = vmatpush.msra.mxu0 %v671
        %v673 = vand.u32 %v526, 4294901760
        %674 = vmatmul.f32.gmra.mxu0 %v673
        %v675 = vpop.f32.mrf.mxu0
        %v676 = vadd.f32 %v654, %v675
        %677 = vdwg.mxu0
        %v679 = vrot.slane %v676, 1
        %v681 = vadd.f32 %v676, %v679
        %v682 = vxor.u32 %v681, 2147483648
        %v683 = vmul.f32 %v682, 1.442695
        %v684 = vpow.pop %v683
        %v685 = vadd.f32 %v684, 1.0
        %v686 = vrcp.pop %v685
        %v687 = vmul.f32 %v685, %v686
        %v688 = vsub.f32 1.0, %v687
        %v689 = vmul.f32 %v686, %v688
        %v690 = vadd.f32 %v686, %v689
        %vm691 = vweird.f32 %v685
        %vm692 = vweird.f32 %v686
        %vm693 = vmor %vm691, %vm692
        %v694 = vsel %vm693, %v686, %v690
        %v695 = vand.u32 2147483647, %v685
        %vm696 = vcmp.eq.f32.partialorder %v695, 8.507059e+37
        %v697 = vand.u32 %v685, 2147483648
        %v698 = vor.u32 1.1754944e-38, %v697
        %v699 = vsel %vm696, %v698, %v694
        %v700 = vmul.f32 1.0, %v699
        %v701 = vperm.slane %v700, 0
        %v702 = vlaneseq
        %v703 = vshrl.u32 %v702, 7
        %705 = vset.pattern.permute.xlu0 %v703
        %706 = vperm.xlu0 %705, %v701
        %v707 = vpop.permute.xlu0 %706
        %v708 = vlaneseq
        %v709 = vshrl.u32 %v708, 7
        %v710 = vadd.s32 %v709, 8
        %711 = vset.pattern.permute.xlu0 %v710
        %712 = vperm.xlu0 %711, %v701
        %v713 = vpop.permute.xlu0 %712
        %v714 = vlaneseq
        %v715 = vshrl.u32 %v714, 7
        %v716 = vadd.s32 %v715, 16
        %717 = vset.pattern.permute.xlu0 %v716
        %718 = vperm.xlu0 %717, %v701
        %v719 = vpop.permute.xlu0 %718
        %v720 = vlaneseq
        %v721 = vshrl.u32 %v720, 7
        %v722 = vadd.s32 %v721, 24
        %723 = vset.pattern.permute.xlu0 %v722
        %724 = vperm.xlu0 %723, %v701
        %v725 = vpop.permute.xlu0 %724
        %v726 = vmul.f32 %v259, %v707
        %v727 = vmul.f32 %v260, %v707
        %v728 = vmul.f32 %v261, %v713
        %v729 = vmul.f32 %v262, %v713
        %v730 = vmul.f32 %v263, %v719
        %v731 = vmul.f32 %v264, %v719
        %v732 = vmul.f32 %v265, %v725
        %v733 = vmul.f32 %v266, %v725
        %v734 = vadd.f32 %v726, %v728
        %v735 = vadd.f32 %v734, %v730
        %v736 = vadd.f32 %v735, %v732
        %v737 = vrot.slane %v736, 4
        %v738 = vadd.f32 %v736, %v737
        %v739 = vrot.slane %v738, 2
        %v740 = vadd.f32 %v738, %v739
        %v741 = vrot.slane %v740, 1
        %v742 = vadd.f32 %v740, %v741
        %v743 = vadd.f32 %v727, %v729
        %v744 = vadd.f32 %v743, %v731
        %v745 = vadd.f32 %v744, %v733
        %v746 = vrot.slane %v745, 4
        %v747 = vadd.f32 %v745, %v746
        %v748 = vrot.slane %v747, 2
        %v749 = vadd.f32 %v747, %v748
        %v750 = vrot.slane %v749, 1
        %v751 = vadd.f32 %v749, %v750
        %v752 = vmul.f32 %v742, 0.03125
        %v753 = vmul.f32 %v751, 0.03125
        %v754 = vmax.f32 %v726, %v730
        %v755 = vmax.f32 %v728, %v732
        %v756 = vmax.f32 %v754, %v755
        %v757 = vrot.slane %v756, 4
        %v758 = vmax.f32 %v756, %v757
        %v759 = vrot.slane %v758, 2
        %v760 = vmax.f32 %v758, %v759
        %v761 = vrot.slane %v760, 1
        %v762 = vmax.f32 %v760, %v761
        %v763 = vmax.f32 %v727, %v731
        %v764 = vmax.f32 %v729, %v733
        %v765 = vmax.f32 %v763, %v764
        %v766 = vrot.slane %v765, 4
        %v767 = vmax.f32 %v765, %v766
        %v768 = vrot.slane %v767, 2
        %v769 = vmax.f32 %v767, %v768
        %v770 = vrot.slane %v769, 1
        %v771 = vmax.f32 %v769, %v770
        %v772 = vsel %vm327, %v752, %v762
        %v773 = vsel %vm327, %v753, %v771
        %776 = vrot.lane.b32.xlu0 %v772, 51
        %v777 = vpop.permute.xlu0 %776
        %778 = vrot.lane.b32.xlu0 %v773, 51
        %v779 = vpop.permute.xlu0 %778
        %vm780 = vcmask 416768
        %v781 = vsel %vm780, %v777, %v779
        %v785 = vsel %vm780, 0.0, %v777
        %v786 = vsel %vm780, %v779, 0.0
        %v787 = vld [vmem:[%s2] sm:$0x7f]
        %v788 = vld [vmem:[%s2 + $0x8] sm:$0x7f]
        %s789 = sld [smem:[#allocation2]]
        %s790 = sld [smem:[#allocation2 + $0x1]]
        %s791 = sld [smem:[#allocation2 + $0x2]]
        %s792 = sld [smem:[#allocation2 + $0x3]]
        %s793 = sld [smem:[#allocation2 + $0x4]]
        %s794 = sld [smem:[#allocation2 + $0x5]]
        %s795 = sld [smem:[#allocation2 + $0x6]]
        %s796 = sld [smem:[#allocation2 + $0x7]]
        %s797 = sld [smem:[#allocation2 + $0x8]]
        %s798 = sld [smem:[#allocation2 + $0x9]]
        %s799 = sld [smem:[#allocation2 + $0xa]]
        %s800 = sld [smem:[#allocation2 + $0xb]]
        %s801 = sld [smem:[#allocation2 + $0xc]]
        %s802 = sld [smem:[#allocation2 + $0xd]]
        %s803 = sld [smem:[#allocation2 + $0xe]]
        %s804 = sld [smem:[#allocation2 + $0xf]]
        %s805 = sld [smem:[#allocation2 + $0x10]]
        %s806 = sld [smem:[#allocation2 + $0x11]]
        %s807 = sld [smem:[#allocation2 + $0x12]]
        %s808 = sld [smem:[#allocation2 + $0x13]]
        %s809 = sld [smem:[#allocation2 + $0x14]]
        %s810 = sld [smem:[#allocation2 + $0x15]]
        %s811 = sld [smem:[#allocation2 + $0x16]]
        %s812 = sld [smem:[#allocation2 + $0x17]]
        %s813 = sld [smem:[#allocation2 + $0x18]]
        %s814 = sld [smem:[#allocation2 + $0x19]]
        %s815 = sld [smem:[#allocation2 + $0x1a]]
        %s816 = sld [smem:[#allocation2 + $0x1b]]
        %s817 = sld [smem:[#allocation2 + $0x1c]]
        %s818 = sld [smem:[#allocation2 + $0x1d]]
        %s819 = sld [smem:[#allocation2 + $0x1e]]
        %s820 = sld [smem:[#allocation2 + $0x1f]]
        %s821 = sld [smem:[#allocation2 + $0x20]]
        %s822 = sld [smem:[#allocation2 + $0x21]]
        %s823 = sld [smem:[#allocation2 + $0x22]]
        %s824 = sld [smem:[#allocation2 + $0x23]]
        %s825 = sld [smem:[#allocation2 + $0x24]]
        %s826 = sld [smem:[#allocation2 + $0x25]]
        %s827 = sld [smem:[#allocation2 + $0x26]]
        %s828 = sld [smem:[#allocation2 + $0x27]]
        %s829 = sld [smem:[#allocation2 + $0x28]]
        %s830 = sld [smem:[#allocation2 + $0x29]]
        %s831 = sld [smem:[#allocation2 + $0x2a]]
        %s832 = sld [smem:[#allocation2 + $0x2b]]
        %s833 = sld [smem:[#allocation2 + $0x2c]]
        %s834 = sld [smem:[#allocation2 + $0x2d]]
        %s835 = sld [smem:[#allocation2 + $0x2e]]
        %s836 = sld [smem:[#allocation2 + $0x2f]]
        %s837 = sld [smem:[#allocation2 + $0x30]]
        %s838 = sld [smem:[#allocation2 + $0x31]]
        %s839 = sld [smem:[#allocation2 + $0x32]]
        %s840 = sld [smem:[#allocation2 + $0x33]]
        %s841 = sld [smem:[#allocation2 + $0x34]]
        %s842 = sld [smem:[#allocation2 + $0x35]]
        %s843 = sld [smem:[#allocation2 + $0x36]]
        %s844 = sld [smem:[#allocation2 + $0x37]]
        %s845 = sld [smem:[#allocation2 + $0x38]]
        %s846 = sld [smem:[#allocation2 + $0x39]]
        %s847 = sld [smem:[#allocation2 + $0x3a]]
        %s848 = sld [smem:[#allocation2 + $0x3b]]
        %s849 = sld [smem:[#allocation2 + $0x3c]]
        %s850 = sld [smem:[#allocation2 + $0x3d]]
        %s851 = sld [smem:[#allocation2 + $0x3e]]
        %s852 = sld [smem:[#allocation2 + $0x3f]]
        %s853 = sld [smem:[#allocation2 + $0x40]]
        %s854 = sld [smem:[#allocation2 + $0x41]]
        %s855 = sld [smem:[#allocation2 + $0x42]]
        %s856 = sld [smem:[#allocation2 + $0x43]]
        %s857 = sld [smem:[#allocation2 + $0x44]]
        %s858 = sld [smem:[#allocation2 + $0x45]]
        %s859 = sld [smem:[#allocation2 + $0x46]]
        %s860 = sld [smem:[#allocation2 + $0x47]]
        %s861 = sld [smem:[#allocation2 + $0x48]]
        %s862 = sld [smem:[#allocation2 + $0x49]]
        %s863 = sld [smem:[#allocation2 + $0x4a]]
        %s864 = sld [smem:[#allocation2 + $0x4b]]
        %s865 = sld [smem:[#allocation2 + $0x4c]]
        %s866 = sld [smem:[#allocation2 + $0x4d]]
        %s867 = sld [smem:[#allocation2 + $0x4e]]
        %s868 = sld [smem:[#allocation2 + $0x4f]]
        %s869 = sld [smem:[#allocation2 + $0x50]]
        %s870 = sld [smem:[#allocation2 + $0x51]]
        %s871 = sld [smem:[#allocation2 + $0x52]]
        %s872 = sld [smem:[#allocation2 + $0x53]]
        %s873 = sld [smem:[#allocation2 + $0x54]]
        %s874 = sld [smem:[#allocation2 + $0x55]]
        %s875 = sld [smem:[#allocation2 + $0x56]]
        %s876 = sld [smem:[#allocation2 + $0x57]]
        %s877 = sld [smem:[#allocation2 + $0x58]]
        %s878 = sld [smem:[#allocation2 + $0x59]]
        %s879 = sld [smem:[#allocation2 + $0x5a]]
        %s880 = sld [smem:[#allocation2 + $0x5b]]
        %s881 = sld [smem:[#allocation2 + $0x5c]]
        %s882 = sld [smem:[#allocation2 + $0x5d]]
        %s883 = sld [smem:[#allocation2 + $0x5e]]
        %s884 = sld [smem:[#allocation2 + $0x5f]]
        %s885 = sld [smem:[#allocation2 + $0x60]]
        %s886 = sld [smem:[#allocation2 + $0x61]]
        %v887 = vlaneseq
        %v888 = vshrl.u32 %v887, 7
        %vm889 = vcmp.lt.s32.totalorder %v888, 1
        %v890 = vstv %s789
        %v891 = vstv %s838
        %v892 = vsel %vm889, %v890, %v891
        %v893 = vmul.f32 %v892, %v785
        %v894 = vmul.f32 %v892, %v781
        %v895 = vstv %s796
        %v896 = vstv %s845
        %v897 = vsel %vm889, %v895, %v896
        %v898 = vmul.f32 %v897, %v785
        %v899 = vmul.f32 %v897, %v781
        %v900 = vmul.f32 %v897, %v786
        %904 = vrot.lane.b32.xlu0 %v898, 112
        %v905 = vpop.permute.xlu0 %904
        %906 = vrot.lane.b32.xlu0 %v899, 112
        %v907 = vpop.permute.xlu0 %906
        %908 = vrot.lane.b32.xlu0 %v900, 112
        %v909 = vpop.permute.xlu0 %908
        %vm910 = vcmask 916480
        %v911 = vsel %vm910, %v905, %v907
        %v912 = vsel %vm910, %v907, %v909
        %v915 = vadd.f32 %v893, %v911
        %v916 = vadd.f32 %v894, %v912
        %v917 = vstv %s803
        %v918 = vstv %s852
        %v919 = vsel %vm889, %v917, %v918
        %v920 = vmul.f32 %v919, %v785
        %v921 = vmul.f32 %v919, %v781
        %v922 = vmul.f32 %v919, %v786
        %926 = vrot.lane.b32.xlu0 %v920, 96
        %v927 = vpop.permute.xlu0 %926
        %928 = vrot.lane.b32.xlu0 %v921, 96
        %v929 = vpop.permute.xlu0 %928
        %930 = vrot.lane.b32.xlu0 %v922, 96
        %v931 = vpop.permute.xlu0 %930
        %vm932 = vcmask 785408
        %v933 = vsel %vm932, %v927, %v929
        %v934 = vsel %vm932, %v929, %v931
        %v937 = vadd.f32 %v915, %v933
        %v938 = vadd.f32 %v916, %v934
        %v939 = vstv %s810
        %v940 = vstv %s859
        %v941 = vsel %vm889, %v939, %v940
        %v942 = vmul.f32 %v941, %v785
        %v943 = vmul.f32 %v941, %v781
        %v944 = vmul.f32 %v941, %v786
        %948 = vrot.lane.b32.xlu0 %v942, 80
        %v949 = vpop.permute.xlu0 %948
        %950 = vrot.lane.b32.xlu0 %v943, 80
        %v951 = vpop.permute.xlu0 %950
        %952 = vrot.lane.b32.xlu0 %v944, 80
        %v953 = vpop.permute.xlu0 %952
        %vm954 = vcmask 654336
        %v955 = vsel %vm954, %v949, %v951
        %v956 = vsel %vm954, %v951, %v953
        %v959 = vadd.f32 %v937, %v955
        %v960 = vadd.f32 %v938, %v956
        %v961 = vstv %s817
        %v962 = vstv %s866
        %v963 = vsel %vm889, %v961, %v962
        %v964 = vmul.f32 %v963, %v785
        %v965 = vmul.f32 %v963, %v781
        %v966 = vmul.f32 %v963, %v786
        %970 = vrot.lane.b32.xlu0 %v964, 64
        %v971 = vpop.permute.xlu0 %970
        %972 = vrot.lane.b32.xlu0 %v965, 64
        %v973 = vpop.permute.xlu0 %972
        %974 = vrot.lane.b32.xlu0 %v966, 64
        %v975 = vpop.permute.xlu0 %974
        %vm976 = vcmask 523264
        %v977 = vsel %vm976, %v971, %v973
        %v978 = vsel %vm976, %v973, %v975
        %v981 = vadd.f32 %v959, %v977
        %v982 = vadd.f32 %v960, %v978
        %v983 = vstv %s824
        %v984 = vstv %s873
        %v985 = vsel %vm889, %v983, %v984
        %v986 = vmul.f32 %v985, %v785
        %v987 = vmul.f32 %v985, %v781
        %v988 = vmul.f32 %v985, %v786
        %992 = vrot.lane.b32.xlu0 %v986, 48
        %v993 = vpop.permute.xlu0 %992
        %994 = vrot.lane.b32.xlu0 %v987, 48
        %v995 = vpop.permute.xlu0 %994
        %996 = vrot.lane.b32.xlu0 %v988, 48
        %v997 = vpop.permute.xlu0 %996
        %vm998 = vcmask 392192
        %v999 = vsel %vm998, %v993, %v995
        %v1000 = vsel %vm998, %v995, %v997
        %v1003 = vadd.f32 %v981, %v999
        %v1004 = vadd.f32 %v982, %v1000
        %v1005 = vstv %s831
        %v1006 = vstv %s880
        %v1007 = vsel %vm889, %v1005, %v1006
        %v1008 = vmul.f32 %v1007, %v785
        %v1009 = vmul.f32 %v1007, %v781
        %v1010 = vmul.f32 %v1007, %v786
        %1014 = vrot.lane.b32.xlu0 %v1008, 32
        %v1015 = vpop.permute.xlu0 %1014
        %1016 = vrot.lane.b32.xlu0 %v1009, 32
        %v1017 = vpop.permute.xlu0 %1016
        %1018 = vrot.lane.b32.xlu0 %v1010, 32
        %v1019 = vpop.permute.xlu0 %1018
        %v1020 = vsel %vm333, %v1015, %v1017
        %v1021 = vsel %vm333, %v1017, %v1019
        %v1024 = vadd.f32 %v1003, %v1020
        %v1025 = vadd.f32 %v1004, %v1021
        %v1026 = vperm.slane %v787, 0
        %v1027 = vperm.slane %v788, 0
        %v1028 = vmul.f32 %v1026, %v1024
        %v1029 = vmul.f32 %v1027, %v1025
        %v1030 = vstv %s790
        %v1031 = vstv %s839
        %v1032 = vsel %vm889, %v1030, %v1031
        %v1033 = vmul.f32 %v1032, %v785
        %v1034 = vmul.f32 %v1032, %v781
        %v1035 = vmul.f32 %v1032, %v786
        %v1036 = vstv %s797
        %v1037 = vstv %s846
        %v1038 = vsel %vm889, %v1036, %v1037
        %v1039 = vmul.f32 %v1038, %v785
        %v1040 = vmul.f32 %v1038, %v781
        %v1041 = vmul.f32 %v1038, %v786
        %1045 = vrot.lane.b32.xlu0 %v1039, 112
        %v1046 = vpop.permute.xlu0 %1045
        %1047 = vrot.lane.b32.xlu0 %v1040, 112
        %v1048 = vpop.permute.xlu0 %1047
        %1049 = vrot.lane.b32.xlu0 %v1041, 112
        %v1050 = vpop.permute.xlu0 %1049
        %v1051 = vsel %vm910, %v1046, %v1048
        %v1052 = vsel %vm910, %v1048, %v1050
        %v1056 = vadd.f32 %v1033, %v1051
        %v1057 = vadd.f32 %v1034, %v1052
        %v1058 = vadd.f32 %v1035, %v1050
        %v1059 = vstv %s804
        %v1060 = vstv %s853
        %v1061 = vsel %vm889, %v1059, %v1060
        %v1062 = vmul.f32 %v1061, %v785
        %v1063 = vmul.f32 %v1061, %v781
        %v1064 = vmul.f32 %v1061, %v786
        %1068 = vrot.lane.b32.xlu0 %v1062, 96
        %v1069 = vpop.permute.xlu0 %1068
        %1070 = vrot.lane.b32.xlu0 %v1063, 96
        %v1071 = vpop.permute.xlu0 %1070
        %1072 = vrot.lane.b32.xlu0 %v1064, 96
        %v1073 = vpop.permute.xlu0 %1072
        %v1074 = vsel %vm932, %v1069, %v1071
        %v1075 = vsel %vm932, %v1071, %v1073
        %v1079 = vadd.f32 %v1056, %v1074
        %v1080 = vadd.f32 %v1057, %v1075
        %v1081 = vadd.f32 %v1058, %v1073
        %v1082 = vstv %s811
        %v1083 = vstv %s860
        %v1084 = vsel %vm889, %v1082, %v1083
        %v1085 = vmul.f32 %v1084, %v785
        %v1086 = vmul.f32 %v1084, %v781
        %v1087 = vmul.f32 %v1084, %v786
        %1091 = vrot.lane.b32.xlu0 %v1085, 80
        %v1092 = vpop.permute.xlu0 %1091
        %1093 = vrot.lane.b32.xlu0 %v1086, 80
        %v1094 = vpop.permute.xlu0 %1093
        %1095 = vrot.lane.b32.xlu0 %v1087, 80
        %v1096 = vpop.permute.xlu0 %1095
        %v1097 = vsel %vm954, %v1092, %v1094
        %v1098 = vsel %vm954, %v1094, %v1096
        %v1102 = vadd.f32 %v1079, %v1097
        %v1103 = vadd.f32 %v1080, %v1098
        %v1104 = vadd.f32 %v1081, %v1096
        %v1105 = vstv %s818
        %v1106 = vstv %s867
        %v1107 = vsel %vm889, %v1105, %v1106
        %v1108 = vmul.f32 %v1107, %v785
        %v1109 = vmul.f32 %v1107, %v781
        %v1110 = vmul.f32 %v1107, %v786
        %1114 = vrot.lane.b32.xlu0 %v1108, 64
        %v1115 = vpop.permute.xlu0 %1114
        %1116 = vrot.lane.b32.xlu0 %v1109, 64
        %v1117 = vpop.permute.xlu0 %1116
        %1118 = vrot.lane.b32.xlu0 %v1110, 64
        %v1119 = vpop.permute.xlu0 %1118
        %v1120 = vsel %vm976, %v1115, %v1117
        %v1121 = vsel %vm976, %v1117, %v1119
        %v1125 = vadd.f32 %v1102, %v1120
        %v1126 = vadd.f32 %v1103, %v1121
        %v1127 = vadd.f32 %v1104, %v1119
        %v1128 = vstv %s825
        %v1129 = vstv %s874
        %v1130 = vsel %vm889, %v1128, %v1129
        %v1131 = vmul.f32 %v1130, %v785
        %v1132 = vmul.f32 %v1130, %v781
        %v1133 = vmul.f32 %v1130, %v786
        %1137 = vrot.lane.b32.xlu0 %v1131, 48
        %v1138 = vpop.permute.xlu0 %1137
        %1139 = vrot.lane.b32.xlu0 %v1132, 48
        %v1140 = vpop.permute.xlu0 %1139
        %1141 = vrot.lane.b32.xlu0 %v1133, 48
        %v1142 = vpop.permute.xlu0 %1141
        %v1143 = vsel %vm998, %v1138, %v1140
        %v1144 = vsel %vm998, %v1140, %v1142
        %v1148 = vadd.f32 %v1125, %v1143
        %v1149 = vadd.f32 %v1126, %v1144
        %v1150 = vadd.f32 %v1127, %v1142
        %v1151 = vstv %s832
        %v1152 = vstv %s881
        %v1153 = vsel %vm889, %v1151, %v1152
        %v1154 = vmul.f32 %v1153, %v785
        %v1155 = vmul.f32 %v1153, %v781
        %v1156 = vmul.f32 %v1153, %v786
        %1160 = vrot.lane.b32.xlu0 %v1154, 32
        %v1161 = vpop.permute.xlu0 %1160
        %1162 = vrot.lane.b32.xlu0 %v1155, 32
        %v1163 = vpop.permute.xlu0 %1162
        %1164 = vrot.lane.b32.xlu0 %v1156, 32
        %v1165 = vpop.permute.xlu0 %1164
        %v1166 = vsel %vm333, %v1161, %v1163
        %v1167 = vsel %vm333, %v1163, %v1165
        %v1171 = vadd.f32 %v1148, %v1166
        %v1172 = vadd.f32 %v1149, %v1167
        %v1173 = vadd.f32 %v1150, %v1165
        %v1174 = vperm.slane %v787, 1
        %v1175 = vperm.slane %v788, 1
        %1179 = vrot.lane.b32.xlu0 %v1171, 127
        %v1180 = vpop.permute.xlu0 %1179
        %1181 = vrot.lane.b32.xlu0 %v1172, 127
        %v1182 = vpop.permute.xlu0 %1181
        %1183 = vrot.lane.b32.xlu0 %v1173, 127
        %v1184 = vpop.permute.xlu0 %1183
        %vm1185 = vcmask 1039360
        %v1186 = vsel %vm1185, %v1180, %v1182
        %v1187 = vsel %vm1185, %v1182, %v1184
        %v1190 = vmul.f32 %v1174, %v1186
        %v1191 = vmul.f32 %v1175, %v1187
        %v1192 = vstv %s791
        %v1193 = vstv %s840
        %v1194 = vsel %vm889, %v1192, %v1193
        %v1195 = vmul.f32 %v1194, %v785
        %v1196 = vmul.f32 %v1194, %v781
        %v1197 = vmul.f32 %v1194, %v786
        %v1198 = vstv %s798
        %v1199 = vstv %s847
        %v1200 = vsel %vm889, %v1198, %v1199
        %v1201 = vmul.f32 %v1200, %v785
        %v1202 = vmul.f32 %v1200, %v781
        %v1203 = vmul.f32 %v1200, %v786
        %1207 = vrot.lane.b32.xlu0 %v1201, 112
        %v1208 = vpop.permute.xlu0 %1207
        %1209 = vrot.lane.b32.xlu0 %v1202, 112
        %v1210 = vpop.permute.xlu0 %1209
        %1211 = vrot.lane.b32.xlu0 %v1203, 112
        %v1212 = vpop.permute.xlu0 %1211
        %v1213 = vsel %vm910, %v1208, %v1210
        %v1214 = vsel %vm910, %v1210, %v1212
        %v1218 = vadd.f32 %v1195, %v1213
        %v1219 = vadd.f32 %v1196, %v1214
        %v1220 = vadd.f32 %v1197, %v1212
        %v1221 = vstv %s805
        %v1222 = vstv %s854
        %v1223 = vsel %vm889, %v1221, %v1222
        %v1224 = vmul.f32 %v1223, %v785
        %v1225 = vmul.f32 %v1223, %v781
        %v1226 = vmul.f32 %v1223, %v786
        %1230 = vrot.lane.b32.xlu0 %v1224, 96
        %v1231 = vpop.permute.xlu0 %1230
        %1232 = vrot.lane.b32.xlu0 %v1225, 96
        %v1233 = vpop.permute.xlu0 %1232
        %1234 = vrot.lane.b32.xlu0 %v1226, 96
        %v1235 = vpop.permute.xlu0 %1234
        %v1236 = vsel %vm932, %v1231, %v1233
        %v1237 = vsel %vm932, %v1233, %v1235
        %v1241 = vadd.f32 %v1218, %v1236
        %v1242 = vadd.f32 %v1219, %v1237
        %v1243 = vadd.f32 %v1220, %v1235
        %v1244 = vstv %s812
        %v1245 = vstv %s861
        %v1246 = vsel %vm889, %v1244, %v1245
        %v1247 = vmul.f32 %v1246, %v785
        %v1248 = vmul.f32 %v1246, %v781
        %v1249 = vmul.f32 %v1246, %v786
        %1253 = vrot.lane.b32.xlu0 %v1247, 80
        %v1254 = vpop.permute.xlu0 %1253
        %1255 = vrot.lane.b32.xlu0 %v1248, 80
        %v1256 = vpop.permute.xlu0 %1255
        %1257 = vrot.lane.b32.xlu0 %v1249, 80
        %v1258 = vpop.permute.xlu0 %1257
        %v1259 = vsel %vm954, %v1254, %v1256
        %v1260 = vsel %vm954, %v1256, %v1258
        %v1264 = vadd.f32 %v1241, %v1259
        %v1265 = vadd.f32 %v1242, %v1260
        %v1266 = vadd.f32 %v1243, %v1258
        %v1267 = vstv %s819
        %v1268 = vstv %s868
        %v1269 = vsel %vm889, %v1267, %v1268
        %v1270 = vmul.f32 %v1269, %v785
        %v1271 = vmul.f32 %v1269, %v781
        %v1272 = vmul.f32 %v1269, %v786
        %1276 = vrot.lane.b32.xlu0 %v1270, 64
        %v1277 = vpop.permute.xlu0 %1276
        %1278 = vrot.lane.b32.xlu0 %v1271, 64
        %v1279 = vpop.permute.xlu0 %1278
        %1280 = vrot.lane.b32.xlu0 %v1272, 64
        %v1281 = vpop.permute.xlu0 %1280
        %v1282 = vsel %vm976, %v1277, %v1279
        %v1283 = vsel %vm976, %v1279, %v1281
        %v1287 = vadd.f32 %v1264, %v1282
        %v1288 = vadd.f32 %v1265, %v1283
        %v1289 = vadd.f32 %v1266, %v1281
        %v1290 = vstv %s826
        %v1291 = vstv %s875
        %v1292 = vsel %vm889, %v1290, %v1291
        %v1293 = vmul.f32 %v1292, %v785
        %v1294 = vmul.f32 %v1292, %v781
        %v1295 = vmul.f32 %v1292, %v786
        %1299 = vrot.lane.b32.xlu0 %v1293, 48
        %v1300 = vpop.permute.xlu0 %1299
        %1301 = vrot.lane.b32.xlu0 %v1294, 48
        %v1302 = vpop.permute.xlu0 %1301
        %1303 = vrot.lane.b32.xlu0 %v1295, 48
        %v1304 = vpop.permute.xlu0 %1303
        %v1305 = vsel %vm998, %v1300, %v1302
        %v1306 = vsel %vm998, %v1302, %v1304
        %v1310 = vadd.f32 %v1287, %v1305
        %v1311 = vadd.f32 %v1288, %v1306
        %v1312 = vadd.f32 %v1289, %v1304
        %v1313 = vstv %s833
        %v1314 = vstv %s882
        %v1315 = vsel %vm889, %v1313, %v1314
        %v1316 = vmul.f32 %v1315, %v785
        %v1317 = vmul.f32 %v1315, %v781
        %v1318 = vmul.f32 %v1315, %v786
        %1322 = vrot.lane.b32.xlu0 %v1316, 32
        %v1323 = vpop.permute.xlu0 %1322
        %1324 = vrot.lane.b32.xlu0 %v1317, 32
        %v1325 = vpop.permute.xlu0 %1324
        %1326 = vrot.lane.b32.xlu0 %v1318, 32
        %v1327 = vpop.permute.xlu0 %1326
        %v1328 = vsel %vm333, %v1323, %v1325
        %v1329 = vsel %vm333, %v1325, %v1327
        %v1333 = vadd.f32 %v1310, %v1328
        %v1334 = vadd.f32 %v1311, %v1329
        %v1335 = vadd.f32 %v1312, %v1327
        %v1336 = vperm.slane %v787, 2
        %v1337 = vperm.slane %v788, 2
        %1341 = vrot.lane.b32.xlu0 %v1333, 126
        %v1342 = vpop.permute.xlu0 %1341
        %1343 = vrot.lane.b32.xlu0 %v1334, 126
        %v1344 = vpop.permute.xlu0 %1343
        %1345 = vrot.lane.b32.xlu0 %v1335, 126
        %v1346 = vpop.permute.xlu0 %1345
        %vm1347 = vcmask 1031168
        %v1348 = vsel %vm1347, %v1342, %v1344
        %v1349 = vsel %vm1347, %v1344, %v1346
        %v1352 = vmul.f32 %v1336, %v1348
        %v1353 = vmul.f32 %v1337, %v1349
        %v1354 = vstv %s792
        %v1355 = vstv %s841
        %v1356 = vsel %vm889, %v1354, %v1355
        %v1357 = vmul.f32 %v1356, %v785
        %v1358 = vmul.f32 %v1356, %v781
        %v1359 = vmul.f32 %v1356, %v786
        %v1360 = vstv %s799
        %v1361 = vstv %s848
        %v1362 = vsel %vm889, %v1360, %v1361
        %v1363 = vmul.f32 %v1362, %v785
        %v1364 = vmul.f32 %v1362, %v781
        %v1365 = vmul.f32 %v1362, %v786
        %1369 = vrot.lane.b32.xlu0 %v1363, 112
        %v1370 = vpop.permute.xlu0 %1369
        %1371 = vrot.lane.b32.xlu0 %v1364, 112
        %v1372 = vpop.permute.xlu0 %1371
        %1373 = vrot.lane.b32.xlu0 %v1365, 112
        %v1374 = vpop.permute.xlu0 %1373
        %v1375 = vsel %vm910, %v1370, %v1372
        %v1376 = vsel %vm910, %v1372, %v1374
        %v1380 = vadd.f32 %v1357, %v1375
        %v1381 = vadd.f32 %v1358, %v1376
        %v1382 = vadd.f32 %v1359, %v1374
        %v1383 = vstv %s806
        %v1384 = vstv %s855
        %v1385 = vsel %vm889, %v1383, %v1384
        %v1386 = vmul.f32 %v1385, %v785
        %v1387 = vmul.f32 %v1385, %v781
        %v1388 = vmul.f32 %v1385, %v786
        %1392 = vrot.lane.b32.xlu0 %v1386, 96
        %v1393 = vpop.permute.xlu0 %1392
        %1394 = vrot.lane.b32.xlu0 %v1387, 96
        %v1395 = vpop.permute.xlu0 %1394
        %1396 = vrot.lane.b32.xlu0 %v1388, 96
        %v1397 = vpop.permute.xlu0 %1396
        %v1398 = vsel %vm932, %v1393, %v1395
        %v1399 = vsel %vm932, %v1395, %v1397
        %v1403 = vadd.f32 %v1380, %v1398
        %v1404 = vadd.f32 %v1381, %v1399
        %v1405 = vadd.f32 %v1382, %v1397
        %v1406 = vstv %s813
        %v1407 = vstv %s862
        %v1408 = vsel %vm889, %v1406, %v1407
        %v1409 = vmul.f32 %v1408, %v785
        %v1410 = vmul.f32 %v1408, %v781
        %v1411 = vmul.f32 %v1408, %v786
        %1415 = vrot.lane.b32.xlu0 %v1409, 80
        %v1416 = vpop.permute.xlu0 %1415
        %1417 = vrot.lane.b32.xlu0 %v1410, 80
        %v1418 = vpop.permute.xlu0 %1417
        %1419 = vrot.lane.b32.xlu0 %v1411, 80
        %v1420 = vpop.permute.xlu0 %1419
        %v1421 = vsel %vm954, %v1416, %v1418
        %v1422 = vsel %vm954, %v1418, %v1420
        %v1426 = vadd.f32 %v1403, %v1421
        %v1427 = vadd.f32 %v1404, %v1422
        %v1428 = vadd.f32 %v1405, %v1420
        %v1429 = vstv %s820
        %v1430 = vstv %s869
        %v1431 = vsel %vm889, %v1429, %v1430
        %v1432 = vmul.f32 %v1431, %v785
        %v1433 = vmul.f32 %v1431, %v781
        %v1434 = vmul.f32 %v1431, %v786
        %1438 = vrot.lane.b32.xlu0 %v1432, 64
        %v1439 = vpop.permute.xlu0 %1438
        %1440 = vrot.lane.b32.xlu0 %v1433, 64
        %v1441 = vpop.permute.xlu0 %1440
        %1442 = vrot.lane.b32.xlu0 %v1434, 64
        %v1443 = vpop.permute.xlu0 %1442
        %v1444 = vsel %vm976, %v1439, %v1441
        %v1445 = vsel %vm976, %v1441, %v1443
        %v1449 = vadd.f32 %v1426, %v1444
        %v1450 = vadd.f32 %v1427, %v1445
        %v1451 = vadd.f32 %v1428, %v1443
        %v1452 = vstv %s827
        %v1453 = vstv %s876
        %v1454 = vsel %vm889, %v1452, %v1453
        %v1455 = vmul.f32 %v1454, %v785
        %v1456 = vmul.f32 %v1454, %v781
        %v1457 = vmul.f32 %v1454, %v786
        %1461 = vrot.lane.b32.xlu0 %v1455, 48
        %v1462 = vpop.permute.xlu0 %1461
        %1463 = vrot.lane.b32.xlu0 %v1456, 48
        %v1464 = vpop.permute.xlu0 %1463
        %1465 = vrot.lane.b32.xlu0 %v1457, 48
        %v1466 = vpop.permute.xlu0 %1465
        %v1467 = vsel %vm998, %v1462, %v1464
        %v1468 = vsel %vm998, %v1464, %v1466
        %v1472 = vadd.f32 %v1449, %v1467
        %v1473 = vadd.f32 %v1450, %v1468
        %v1474 = vadd.f32 %v1451, %v1466
        %v1475 = vstv %s834
        %v1476 = vstv %s883
        %v1477 = vsel %vm889, %v1475, %v1476
        %v1478 = vmul.f32 %v1477, %v785
        %v1479 = vmul.f32 %v1477, %v781
        %v1480 = vmul.f32 %v1477, %v786
        %1484 = vrot.lane.b32.xlu0 %v1478, 32
        %v1485 = vpop.permute.xlu0 %1484
        %1486 = vrot.lane.b32.xlu0 %v1479, 32
        %v1487 = vpop.permute.xlu0 %1486
        %1488 = vrot.lane.b32.xlu0 %v1480, 32
        %v1489 = vpop.permute.xlu0 %1488
        %v1490 = vsel %vm333, %v1485, %v1487
        %v1491 = vsel %vm333, %v1487, %v1489
        %v1495 = vadd.f32 %v1472, %v1490
        %v1496 = vadd.f32 %v1473, %v1491
        %v1497 = vadd.f32 %v1474, %v1489
        %v1498 = vperm.slane %v787, 3
        %v1499 = vperm.slane %v788, 3
        %1503 = vrot.lane.b32.xlu0 %v1495, 125
        %v1504 = vpop.permute.xlu0 %1503
        %1505 = vrot.lane.b32.xlu0 %v1496, 125
        %v1506 = vpop.permute.xlu0 %1505
        %1507 = vrot.lane.b32.xlu0 %v1497, 125
        %v1508 = vpop.permute.xlu0 %1507
        %vm1509 = vcmask 1022976
        %v1510 = vsel %vm1509, %v1504, %v1506
        %v1511 = vsel %vm1509, %v1506, %v1508
        %v1514 = vmul.f32 %v1498, %v1510
        %v1515 = vmul.f32 %v1499, %v1511
        %v1516 = vstv %s793
        %v1517 = vstv %s842
        %v1518 = vsel %vm889, %v1516, %v1517
        %v1519 = vmul.f32 %v1518, %v785
        %v1520 = vmul.f32 %v1518, %v781
        %v1521 = vmul.f32 %v1518, %v786
        %v1522 = vstv %s800
        %v1523 = vstv %s849
        %v1524 = vsel %vm889, %v1522, %v1523
        %v1525 = vmul.f32 %v1524, %v785
        %v1526 = vmul.f32 %v1524, %v781
        %v1527 = vmul.f32 %v1524, %v786
        %1531 = vrot.lane.b32.xlu0 %v1525, 112
        %v1532 = vpop.permute.xlu0 %1531
        %1533 = vrot.lane.b32.xlu0 %v1526, 112
        %v1534 = vpop.permute.xlu0 %1533
        %1535 = vrot.lane.b32.xlu0 %v1527, 112
        %v1536 = vpop.permute.xlu0 %1535
        %v1537 = vsel %vm910, %v1532, %v1534
        %v1538 = vsel %vm910, %v1534, %v1536
        %v1542 = vadd.f32 %v1519, %v1537
        %v1543 = vadd.f32 %v1520, %v1538
        %v1544 = vadd.f32 %v1521, %v1536
        %v1545 = vstv %s807
        %v1546 = vstv %s856
        %v1547 = vsel %vm889, %v1545, %v1546
        %v1548 = vmul.f32 %v1547, %v785
        %v1549 = vmul.f32 %v1547, %v781
        %v1550 = vmul.f32 %v1547, %v786
        %1554 = vrot.lane.b32.xlu0 %v1548, 96
        %v1555 = vpop.permute.xlu0 %1554
        %1556 = vrot.lane.b32.xlu0 %v1549, 96
        %v1557 = vpop.permute.xlu0 %1556
        %1558 = vrot.lane.b32.xlu0 %v1550, 96
        %v1559 = vpop.permute.xlu0 %1558
        %v1560 = vsel %vm932, %v1555, %v1557
        %v1561 = vsel %vm932, %v1557, %v1559
        %v1565 = vadd.f32 %v1542, %v1560
        %v1566 = vadd.f32 %v1543, %v1561
        %v1567 = vadd.f32 %v1544, %v1559
        %v1568 = vstv %s814
        %v1569 = vstv %s863
        %v1570 = vsel %vm889, %v1568, %v1569
        %v1571 = vmul.f32 %v1570, %v785
        %v1572 = vmul.f32 %v1570, %v781
        %v1573 = vmul.f32 %v1570, %v786
        %1577 = vrot.lane.b32.xlu0 %v1571, 80
        %v1578 = vpop.permute.xlu0 %1577
        %1579 = vrot.lane.b32.xlu0 %v1572, 80
        %v1580 = vpop.permute.xlu0 %1579
        %1581 = vrot.lane.b32.xlu0 %v1573, 80
        %v1582 = vpop.permute.xlu0 %1581
        %v1583 = vsel %vm954, %v1578, %v1580
        %v1584 = vsel %vm954, %v1580, %v1582
        %v1588 = vadd.f32 %v1565, %v1583
        %v1589 = vadd.f32 %v1566, %v1584
        %v1590 = vadd.f32 %v1567, %v1582
        %v1591 = vstv %s821
        %v1592 = vstv %s870
        %v1593 = vsel %vm889, %v1591, %v1592
        %v1594 = vmul.f32 %v1593, %v785
        %v1595 = vmul.f32 %v1593, %v781
        %v1596 = vmul.f32 %v1593, %v786
        %1600 = vrot.lane.b32.xlu0 %v1594, 64
        %v1601 = vpop.permute.xlu0 %1600
        %1602 = vrot.lane.b32.xlu0 %v1595, 64
        %v1603 = vpop.permute.xlu0 %1602
        %1604 = vrot.lane.b32.xlu0 %v1596, 64
        %v1605 = vpop.permute.xlu0 %1604
        %v1606 = vsel %vm976, %v1601, %v1603
        %v1607 = vsel %vm976, %v1603, %v1605
        %v1611 = vadd.f32 %v1588, %v1606
        %v1612 = vadd.f32 %v1589, %v1607
        %v1613 = vadd.f32 %v1590, %v1605
        %v1614 = vstv %s828
        %v1615 = vstv %s877
        %v1616 = vsel %vm889, %v1614, %v1615
        %v1617 = vmul.f32 %v1616, %v785
        %v1618 = vmul.f32 %v1616, %v781
        %v1619 = vmul.f32 %v1616, %v786
        %1623 = vrot.lane.b32.xlu0 %v1617, 48
        %v1624 = vpop.permute.xlu0 %1623
        %1625 = vrot.lane.b32.xlu0 %v1618, 48
        %v1626 = vpop.permute.xlu0 %1625
        %1627 = vrot.lane.b32.xlu0 %v1619, 48
        %v1628 = vpop.permute.xlu0 %1627
        %v1629 = vsel %vm998, %v1624, %v1626
        %v1630 = vsel %vm998, %v1626, %v1628
        %v1634 = vadd.f32 %v1611, %v1629
        %v1635 = vadd.f32 %v1612, %v1630
        %v1636 = vadd.f32 %v1613, %v1628
        %v1637 = vstv %s835
        %v1638 = vstv %s884
        %v1639 = vsel %vm889, %v1637, %v1638
        %v1640 = vmul.f32 %v1639, %v785
        %v1641 = vmul.f32 %v1639, %v781
        %v1642 = vmul.f32 %v1639, %v786
        %1646 = vrot.lane.b32.xlu0 %v1640, 32
        %v1647 = vpop.permute.xlu0 %1646
        %1648 = vrot.lane.b32.xlu0 %v1641, 32
        %v1649 = vpop.permute.xlu0 %1648
        %1650 = vrot.lane.b32.xlu0 %v1642, 32
        %v1651 = vpop.permute.xlu0 %1650
        %v1652 = vsel %vm333, %v1647, %v1649
        %v1653 = vsel %vm333, %v1649, %v1651
        %v1657 = vadd.f32 %v1634, %v1652
        %v1658 = vadd.f32 %v1635, %v1653
        %v1659 = vadd.f32 %v1636, %v1651
        %v1660 = vperm.slane %v787, 4
        %v1661 = vperm.slane %v788, 4
        %1665 = vrot.lane.b32.xlu0 %v1657, 124
        %v1666 = vpop.permute.xlu0 %1665
        %1667 = vrot.lane.b32.xlu0 %v1658, 124
        %v1668 = vpop.permute.xlu0 %1667
        %1669 = vrot.lane.b32.xlu0 %v1659, 124
        %v1670 = vpop.permute.xlu0 %1669
        %vm1671 = vcmask 1014784
        %v1672 = vsel %vm1671, %v1666, %v1668
        %v1673 = vsel %vm1671, %v1668, %v1670
        %v1676 = vmul.f32 %v1660, %v1672
        %v1677 = vmul.f32 %v1661, %v1673
        %v1678 = vstv %s794
        %v1679 = vstv %s843
        %v1680 = vsel %vm889, %v1678, %v1679
        %v1681 = vmul.f32 %v1680, %v785
        %v1682 = vmul.f32 %v1680, %v781
        %v1683 = vmul.f32 %v1680, %v786
        %v1684 = vstv %s801
        %v1685 = vstv %s850
        %v1686 = vsel %vm889, %v1684, %v1685
        %v1687 = vmul.f32 %v1686, %v785
        %v1688 = vmul.f32 %v1686, %v781
        %v1689 = vmul.f32 %v1686, %v786
        %1693 = vrot.lane.b32.xlu0 %v1687, 112
        %v1694 = vpop.permute.xlu0 %1693
        %1695 = vrot.lane.b32.xlu0 %v1688, 112
        %v1696 = vpop.permute.xlu0 %1695
        %1697 = vrot.lane.b32.xlu0 %v1689, 112
        %v1698 = vpop.permute.xlu0 %1697
        %v1699 = vsel %vm910, %v1694, %v1696
        %v1700 = vsel %vm910, %v1696, %v1698
        %v1704 = vadd.f32 %v1681, %v1699
        %v1705 = vadd.f32 %v1682, %v1700
        %v1706 = vadd.f32 %v1683, %v1698
        %v1707 = vstv %s808
        %v1708 = vstv %s857
        %v1709 = vsel %vm889, %v1707, %v1708
        %v1710 = vmul.f32 %v1709, %v785
        %v1711 = vmul.f32 %v1709, %v781
        %v1712 = vmul.f32 %v1709, %v786
        %1716 = vrot.lane.b32.xlu0 %v1710, 96
        %v1717 = vpop.permute.xlu0 %1716
        %1718 = vrot.lane.b32.xlu0 %v1711, 96
        %v1719 = vpop.permute.xlu0 %1718
        %1720 = vrot.lane.b32.xlu0 %v1712, 96
        %v1721 = vpop.permute.xlu0 %1720
        %v1722 = vsel %vm932, %v1717, %v1719
        %v1723 = vsel %vm932, %v1719, %v1721
        %v1727 = vadd.f32 %v1704, %v1722
        %v1728 = vadd.f32 %v1705, %v1723
        %v1729 = vadd.f32 %v1706, %v1721
        %v1730 = vstv %s815
        %v1731 = vstv %s864
        %v1732 = vsel %vm889, %v1730, %v1731
        %v1733 = vmul.f32 %v1732, %v785
        %v1734 = vmul.f32 %v1732, %v781
        %v1735 = vmul.f32 %v1732, %v786
        %1739 = vrot.lane.b32.xlu0 %v1733, 80
        %v1740 = vpop.permute.xlu0 %1739
        %1741 = vrot.lane.b32.xlu0 %v1734, 80
        %v1742 = vpop.permute.xlu0 %1741
        %1743 = vrot.lane.b32.xlu0 %v1735, 80
        %v1744 = vpop.permute.xlu0 %1743
        %v1745 = vsel %vm954, %v1740, %v1742
        %v1746 = vsel %vm954, %v1742, %v1744
        %v1750 = vadd.f32 %v1727, %v1745
        %v1751 = vadd.f32 %v1728, %v1746
        %v1752 = vadd.f32 %v1729, %v1744
        %v1753 = vstv %s822
        %v1754 = vstv %s871
        %v1755 = vsel %vm889, %v1753, %v1754
        %v1756 = vmul.f32 %v1755, %v785
        %v1757 = vmul.f32 %v1755, %v781
        %v1758 = vmul.f32 %v1755, %v786
        %1762 = vrot.lane.b32.xlu0 %v1756, 64
        %v1763 = vpop.permute.xlu0 %1762
        %1764 = vrot.lane.b32.xlu0 %v1757, 64
        %v1765 = vpop.permute.xlu0 %1764
        %1766 = vrot.lane.b32.xlu0 %v1758, 64
        %v1767 = vpop.permute.xlu0 %1766
        %v1768 = vsel %vm976, %v1763, %v1765
        %v1769 = vsel %vm976, %v1765, %v1767
        %v1773 = vadd.f32 %v1750, %v1768
        %v1774 = vadd.f32 %v1751, %v1769
        %v1775 = vadd.f32 %v1752, %v1767
        %v1776 = vstv %s829
        %v1777 = vstv %s878
        %v1778 = vsel %vm889, %v1776, %v1777
        %v1779 = vmul.f32 %v1778, %v785
        %v1780 = vmul.f32 %v1778, %v781
        %v1781 = vmul.f32 %v1778, %v786
        %1785 = vrot.lane.b32.xlu0 %v1779, 48
        %v1786 = vpop.permute.xlu0 %1785
        %1787 = vrot.lane.b32.xlu0 %v1780, 48
        %v1788 = vpop.permute.xlu0 %1787
        %1789 = vrot.lane.b32.xlu0 %v1781, 48
        %v1790 = vpop.permute.xlu0 %1789
        %v1791 = vsel %vm998, %v1786, %v1788
        %v1792 = vsel %vm998, %v1788, %v1790
        %v1796 = vadd.f32 %v1773, %v1791
        %v1797 = vadd.f32 %v1774, %v1792
        %v1798 = vadd.f32 %v1775, %v1790
        %v1799 = vstv %s836
        %v1800 = vstv %s885
        %v1801 = vsel %vm889, %v1799, %v1800
        %v1802 = vmul.f32 %v1801, %v785
        %v1803 = vmul.f32 %v1801, %v781
        %v1804 = vmul.f32 %v1801, %v786
        %1808 = vrot.lane.b32.xlu0 %v1802, 32
        %v1809 = vpop.permute.xlu0 %1808
        %1810 = vrot.lane.b32.xlu0 %v1803, 32
        %v1811 = vpop.permute.xlu0 %1810
        %1812 = vrot.lane.b32.xlu0 %v1804, 32
        %v1813 = vpop.permute.xlu0 %1812
        %v1814 = vsel %vm333, %v1809, %v1811
        %v1815 = vsel %vm333, %v1811, %v1813
        %v1819 = vadd.f32 %v1796, %v1814
        %v1820 = vadd.f32 %v1797, %v1815
        %v1821 = vadd.f32 %v1798, %v1813
        %v1822 = vperm.slane %v787, 5
        %v1823 = vperm.slane %v788, 5
        %1827 = vrot.lane.b32.xlu0 %v1819, 123
        %v1828 = vpop.permute.xlu0 %1827
        %1829 = vrot.lane.b32.xlu0 %v1820, 123
        %v1830 = vpop.permute.xlu0 %1829
        %1831 = vrot.lane.b32.xlu0 %v1821, 123
        %v1832 = vpop.permute.xlu0 %1831
        %vm1833 = vcmask 1006592
        %v1834 = vsel %vm1833, %v1828, %v1830
        %v1835 = vsel %vm1833, %v1830, %v1832
        %v1838 = vmul.f32 %v1822, %v1834
        %v1839 = vmul.f32 %v1823, %v1835
        %v1840 = vstv %s795
        %v1841 = vstv %s844
        %v1842 = vsel %vm889, %v1840, %v1841
        %v1843 = vmul.f32 %v1842, %v785
        %v1844 = vmul.f32 %v1842, %v781
        %v1845 = vmul.f32 %v1842, %v786
        %v1846 = vstv %s802
        %v1847 = vstv %s851
        %v1848 = vsel %vm889, %v1846, %v1847
        %v1849 = vmul.f32 %v1848, %v785
        %v1850 = vmul.f32 %v1848, %v781
        %v1851 = vmul.f32 %v1848, %v786
        %1855 = vrot.lane.b32.xlu0 %v1849, 112
        %v1856 = vpop.permute.xlu0 %1855
        %1857 = vrot.lane.b32.xlu0 %v1850, 112
        %v1858 = vpop.permute.xlu0 %1857
        %1859 = vrot.lane.b32.xlu0 %v1851, 112
        %v1860 = vpop.permute.xlu0 %1859
        %v1861 = vsel %vm910, %v1856, %v1858
        %v1862 = vsel %vm910, %v1858, %v1860
        %v1866 = vadd.f32 %v1843, %v1861
        %v1867 = vadd.f32 %v1844, %v1862
        %v1868 = vadd.f32 %v1845, %v1860
        %v1869 = vstv %s809
        %v1870 = vstv %s858
        %v1871 = vsel %vm889, %v1869, %v1870
        %v1872 = vmul.f32 %v1871, %v785
        %v1873 = vmul.f32 %v1871, %v781
        %v1874 = vmul.f32 %v1871, %v786
        %1878 = vrot.lane.b32.xlu0 %v1872, 96
        %v1879 = vpop.permute.xlu0 %1878
        %1880 = vrot.lane.b32.xlu0 %v1873, 96
        %v1881 = vpop.permute.xlu0 %1880
        %1882 = vrot.lane.b32.xlu0 %v1874, 96
        %v1883 = vpop.permute.xlu0 %1882
        %v1884 = vsel %vm932, %v1879, %v1881
        %v1885 = vsel %vm932, %v1881, %v1883
        %v1889 = vadd.f32 %v1866, %v1884
        %v1890 = vadd.f32 %v1867, %v1885
        %v1891 = vadd.f32 %v1868, %v1883
        %v1892 = vstv %s816
        %v1893 = vstv %s865
        %v1894 = vsel %vm889, %v1892, %v1893
        %v1895 = vmul.f32 %v1894, %v785
        %v1896 = vmul.f32 %v1894, %v781
        %v1897 = vmul.f32 %v1894, %v786
        %1901 = vrot.lane.b32.xlu0 %v1895, 80
        %v1902 = vpop.permute.xlu0 %1901
        %1903 = vrot.lane.b32.xlu0 %v1896, 80
        %v1904 = vpop.permute.xlu0 %1903
        %1905 = vrot.lane.b32.xlu0 %v1897, 80
        %v1906 = vpop.permute.xlu0 %1905
        %v1907 = vsel %vm954, %v1902, %v1904
        %v1908 = vsel %vm954, %v1904, %v1906
        %v1912 = vadd.f32 %v1889, %v1907
        %v1913 = vadd.f32 %v1890, %v1908
        %v1914 = vadd.f32 %v1891, %v1906
        %v1915 = vstv %s823
        %v1916 = vstv %s872
        %v1917 = vsel %vm889, %v1915, %v1916
        %v1918 = vmul.f32 %v1917, %v785
        %v1919 = vmul.f32 %v1917, %v781
        %v1920 = vmul.f32 %v1917, %v786
        %1924 = vrot.lane.b32.xlu0 %v1918, 64
        %v1925 = vpop.permute.xlu0 %1924
        %1926 = vrot.lane.b32.xlu0 %v1919, 64
        %v1927 = vpop.permute.xlu0 %1926
        %1928 = vrot.lane.b32.xlu0 %v1920, 64
        %v1929 = vpop.permute.xlu0 %1928
        %v1930 = vsel %vm976, %v1925, %v1927
        %v1931 = vsel %vm976, %v1927, %v1929
        %v1935 = vadd.f32 %v1912, %v1930
        %v1936 = vadd.f32 %v1913, %v1931
        %v1937 = vadd.f32 %v1914, %v1929
        %v1938 = vstv %s830
        %v1939 = vstv %s879
        %v1940 = vsel %vm889, %v1938, %v1939
        %v1941 = vmul.f32 %v1940, %v785
        %v1942 = vmul.f32 %v1940, %v781
        %v1943 = vmul.f32 %v1940, %v786
        %1947 = vrot.lane.b32.xlu0 %v1941, 48
        %v1948 = vpop.permute.xlu0 %1947
        %1949 = vrot.lane.b32.xlu0 %v1942, 48
        %v1950 = vpop.permute.xlu0 %1949
        %1951 = vrot.lane.b32.xlu0 %v1943, 48
        %v1952 = vpop.permute.xlu0 %1951
        %v1953 = vsel %vm998, %v1948, %v1950
        %v1954 = vsel %vm998, %v1950, %v1952
        %v1958 = vadd.f32 %v1935, %v1953
        %v1959 = vadd.f32 %v1936, %v1954
        %v1960 = vadd.f32 %v1937, %v1952
        %v1961 = vstv %s837
        %v1962 = vstv %s886
        %v1963 = vsel %vm889, %v1961, %v1962
        %v1964 = vmul.f32 %v1963, %v785
        %v1965 = vmul.f32 %v1963, %v781
        %v1966 = vmul.f32 %v1963, %v786
        %1970 = vrot.lane.b32.xlu0 %v1964, 32
        %v1971 = vpop.permute.xlu0 %1970
        %1972 = vrot.lane.b32.xlu0 %v1965, 32
        %v1973 = vpop.permute.xlu0 %1972
        %1974 = vrot.lane.b32.xlu0 %v1966, 32
        %v1975 = vpop.permute.xlu0 %1974
        %v1976 = vsel %vm333, %v1971, %v1973
        %v1977 = vsel %vm333, %v1973, %v1975
        %v1981 = vadd.f32 %v1958, %v1976
        %v1982 = vadd.f32 %v1959, %v1977
        %v1983 = vadd.f32 %v1960, %v1975
        %v1984 = vperm.slane %v787, 6
        %v1985 = vperm.slane %v788, 6
        %1989 = vrot.lane.b32.xlu0 %v1981, 122
        %v1990 = vpop.permute.xlu0 %1989
        %1991 = vrot.lane.b32.xlu0 %v1982, 122
        %v1992 = vpop.permute.xlu0 %1991
        %1993 = vrot.lane.b32.xlu0 %v1983, 122
        %v1994 = vpop.permute.xlu0 %1993
        %vm1995 = vcmask 998400
        %v1996 = vsel %vm1995, %v1990, %v1992
        %v1997 = vsel %vm1995, %v1992, %v1994
        %v2000 = vmul.f32 %v1984, %v1996
        %v2001 = vmul.f32 %v1985, %v1997
        %v2002 = vadd.f32 %v1028, %v1190
        %v2003 = vadd.f32 %v1029, %v1191
        %v2004 = vadd.f32 %v1352, %v1514
        %v2005 = vadd.f32 %v1353, %v1515
        %v2006 = vadd.f32 %v1676, %v1838
        %v2007 = vadd.f32 %v1677, %v1839
        %v2008 = vadd.f32 %v2002, %v2004
        %v2009 = vadd.f32 %v2003, %v2005
        %v2010 = vadd.f32 %v2006, %v2000
        %v2011 = vadd.f32 %v2007, %v2001
        %v2012 = vadd.f32 %v2008, %v2010
        %v2013 = vadd.f32 %v2009, %v2011
        %v2016 = vrot.slane %v2012, 1
        %v2017 = vrot.slane %v2013, 1
        %v2020 = vadd.f32 %v2012, %v2016
        %v2021 = vadd.f32 %v2013, %v2017
        %v2022 = vxor.u32 %v2020, 2147483648
        %v2023 = vxor.u32 %v2021, 2147483648
        %v2024 = vmul.f32 %v2022, 1.442695
        %v2025 = vpow.pop %v2024
        %v2026 = vmul.f32 %v2023, 1.442695
        %v2027 = vpow.pop %v2026
        %v2028 = vadd.f32 %v2025, 1.0
        %v2029 = vadd.f32 %v2027, 1.0
        %v2030 = vrcp.pop %v2028
        %v2031 = vmul.f32 %v2028, %v2030
        %v2032 = vsub.f32 1.0, %v2031
        %v2033 = vmul.f32 %v2030, %v2032
        %v2034 = vadd.f32 %v2030, %v2033
        %vm2035 = vweird.f32 %v2028
        %vm2036 = vweird.f32 %v2030
        %vm2037 = vmor %vm2035, %vm2036
        %v2038 = vsel %vm2037, %v2030, %v2034
        %v2039 = vand.u32 2147483647, %v2028
        %vm2040 = vcmp.eq.f32.partialorder %v2039, 8.507059e+37
        %v2041 = vand.u32 %v2028, 2147483648
        %v2042 = vor.u32 1.1754944e-38, %v2041
        %v2043 = vsel %vm2040, %v2042, %v2038
        %v2044 = vmul.f32 1.0, %v2043
        %v2045 = vrcp.pop %v2029
        %v2046 = vmul.f32 %v2029, %v2045
        %v2047 = vsub.f32 1.0, %v2046
        %v2048 = vmul.f32 %v2045, %v2047
        %v2049 = vadd.f32 %v2045, %v2048
        %vm2050 = vweird.f32 %v2029
        %vm2051 = vweird.f32 %v2045
        %vm2052 = vmor %vm2050, %vm2051
        %v2053 = vsel %vm2052, %v2045, %v2049
        %v2054 = vand.u32 2147483647, %v2029
        %vm2055 = vcmp.eq.f32.partialorder %v2054, 8.507059e+37
        %v2056 = vand.u32 %v2029, 2147483648
        %v2057 = vor.u32 1.1754944e-38, %v2056
        %v2058 = vsel %vm2055, %v2057, %v2053
        %v2059 = vmul.f32 1.0, %v2058
        %v2060 = vperm.slane %v2044, 0
        %v2061 = vperm.slane %v2059, 0
        %v2062 = vmul.f32 %v726, %v2060
        %v2063 = vmul.f32 %v727, %v2061
        %v2064 = vmul.f32 %v728, %v2060
        %v2065 = vmul.f32 %v729, %v2061
        %v2066 = vmul.f32 %v730, %v2060
        %v2067 = vmul.f32 %v731, %v2061
        %v2068 = vmul.f32 %v732, %v2060
        %v2069 = vmul.f32 %v733, %v2061
        %2070 = vst [vmem:[%s258] sm:$0xff] %v2062
        %2071 = vst [vmem:[%s258 + $0x8] sm:$0xff] %v2063
        %2072 = vst [vmem:[%s258 + $0x10] sm:$0xff] %v2064
        %2073 = vst [vmem:[%s258 + $0x18] sm:$0xff] %v2065
        %2074 = vst [vmem:[%s258 + $0x20] sm:$0xff] %v2066
        %2075 = vst [vmem:[%s258 + $0x28] sm:$0xff] %v2067
        %2076 = vst [vmem:[%s258 + $0x30] sm:$0xff] %v2068
        %2077 = vst [vmem:[%s258 + $0x38] sm:$0xff] %v2069
        %s2078 = sand.u32 %s141, 1
        %s2079 = scalar_lea.sflag [#allocation4], %s2078
        %s2080 = sand.u32 %s141, 1
        %s2081 = smul.addr %s2080, 64
        %s2082 = scalar_lea.vmem [#allocation7], %s2081
        // Predicated region
        $region49: #{tpu_custom_call.1} parent=39 // pred_check
          %p2083 = pneg %p151
        $region50: #{tpu_custom_call.1} parent=39 // pred_check_branch
          %2085 = sbr.rel (%p2083) target = $region52
        $region51: #{tpu_custom_call.1} parent=39 // pred_region
          %2087 = vsyncadd %s2079, 0
          %s2088 = smul.addr %s23, 8
          %s2089 = smul.addr %s2088, 8
          %s2090 = scalar_lea.hbm %s5, %s2089
          %s2091 = sshll.u32 %s2082, 4
          %s2092 = int_to_ptr.vmem [resolvable:$true] %s2091
          %s2093 = sshll.u32 %s2090, 4
          %s2094 = int_to_ptr.hbm [resolvable:$true] %s2093
          %2099 = dma.vmem_to_hbm [thread:$0]  %s2092, 1024, %s2094, %s2079, 256, 256, 16
        $region52: #{tpu_custom_call.1} parent=39 // pred_fallthru
          _
      $region40: #{tpu_custom_call.1} parent=5 // pred_fallthru
        _
      %p2100 = scmp.le.s32.totalorder 2, %s18
      // Predicated region
      $region53: #{tpu_custom_call.1} parent=5 // pred_check
        %p2101 = pneg %p2100
      $region54: #{tpu_custom_call.1} parent=5 // pred_check_branch
        %2103 = sbr.rel (%p2101) target = $region56
      $region55: #{tpu_custom_call.1} parent=5 // pred_region
        %s2104 = ssub.s32 %s18, 2
        // Predicated region
        $region57: #{tpu_custom_call.1} parent=55 // pred_check
          %p2105 = pneg %p157
        $region58: #{tpu_custom_call.1} parent=55 // pred_check_branch
          %2107 = sbr.rel (%p2105) target = $region60
        $region59: #{tpu_custom_call.1} parent=55 // pred_region
          %s2108 = sand.u32 %s142, 1
          %s2109 = scalar_lea.sflag [#allocation4], %s2108
          %s2110 = sand.u32 %s142, 1
          %s2111 = smul.addr %s2110, 64
          %s2112 = scalar_lea.vmem [#allocation7], %s2111
          %2114 = dma.done %s2109, 1024
        $region60: #{tpu_custom_call.1} parent=55 // pred_fallthru
          _
      $region56: #{tpu_custom_call.1} parent=5 // pred_fallthru
        _
    $region6: #{tpu_custom_call.1} parent=1 // loop_footer
      %s22 = sadd.s32 1, %s18
    $region7: #{tpu_custom_call.1} parent=1 // loop_footer_branch
      %17 = sbr.rel target = $region3
    $region8: #{tpu_custom_call.1} parent=1 // loop_exit
      _
    %2115 = vsyncpa [#allocation3], 1
    %s2116 = scalar_lea.sflag [#allocation3], 1
    %2117 = vsyncpa %s2116, 1
    %2118 = vsyncpa [#allocation4], 1
    %s2119 = scalar_lea.sflag [#allocation4], 1
    %2120 = vsyncpa %s2119, 1
    %2121 = vsyncpa [#allocation5], 1
    %s2122 = scalar_lea.sflag [#allocation5], 1
    %2123 = vsyncpa %s2122, 1

</llo_original>
